<compile_context>
chip_gen: v6e
topology: v6e:2x2x1
jax: 0.10.0
libtpu: 0.0.40
codegen_flags: <defaults>
</compile_context>

<pallas_src>
import functools

import jax
import jax.numpy as jnp
from jax.experimental import pallas as pl
from jax.experimental.pallas import tpu as pltpu

LN_EPS = 1e-5


def _layernorm(x, gamma, beta):
    # PyTorch nn.LayerNorm: biased variance, eps=1e-5 (all in f32).
    mu = jnp.mean(x, axis=-1, keepdims=True)
    var = jnp.mean((x - mu) ** 2, axis=-1, keepdims=True)
    xn = (x - mu) * jax.lax.rsqrt(var + LN_EPS)
    return xn * gamma + beta


def transformer_block_kernel(
    x_ref,                                   # (bb, T, E)  f32
    wq_ref, wk_ref, wv_ref,                  # (E, H*E)    bf16
    wu_ref, bu_ref,                          # (H*E, E) bf16, (1, E) f32
    g1_ref, bt1_ref,                         # (1, E) f32
    w1_ref, b1_ref,                          # (E, 4E) bf16, (1, 4E) f32
    w2_ref, b2_ref,                          # (4E, E) bf16, (1, E) f32
    g2_ref, bt2_ref,                         # (1, E) f32
    o_ref,                                   # (bb, T, E)  f32
    *, heads, emb, bb, seq,
):
    e = emb
    n = bb * seq
    inv_sqrt_e = 1.0 / (e ** 0.5)            # == (e**-0.25) applied to q and k

    x = x_ref[...].reshape(n, e)             # (N, E) f32  (leading-dim merge)
    xb = x.astype(jnp.bfloat16)

    # -------- projections: three (N,E)@(E,H*E) bf16 matmuls, f32 accum --------
    q = jnp.dot(xb, wq_ref[...], preferred_element_type=jnp.float32)   # (N, H*E)
    k = jnp.dot(xb, wk_ref[...], preferred_element_type=jnp.float32)
    v = jnp.dot(xb, wv_ref[...], preferred_element_type=jnp.float32)

    # -------- attention, batched over the batch axis per head --------
    head_outs = []
    for h in range(heads):                   # static unroll (heads is small)
        lo = h * e
        qh = q[:, lo:lo + e].reshape(bb, seq, e).astype(jnp.bfloat16)
        kh = k[:, lo:lo + e].reshape(bb, seq, e).astype(jnp.bfloat16)
        vh = v[:, lo:lo + e].reshape(bb, seq, e).astype(jnp.bfloat16)
        s = jnp.einsum('bqe,bke->bqk', qh, kh,
                       preferred_element_type=jnp.float32)             # (bb,T,T)
        s = s * inv_sqrt_e
        s = s - jnp.max(s, axis=-1, keepdims=True)
        p = jnp.exp(s)
        p = p * pl.reciprocal(jnp.sum(p, axis=-1, keepdims=True), approx=True)
        oh = jnp.einsum('bqk,bke->bqe', p.astype(jnp.bfloat16), vh,
                        preferred_element_type=jnp.float32)            # (bb,T,E)
        head_outs.append(oh.reshape(n, e))

    # -------- unifyheads: ONE (N,H*E)@(H*E,E) matmul --------
    cat = jnp.concatenate(head_outs, axis=-1).astype(jnp.bfloat16)     # (N, H*E)
    attended = jnp.dot(cat, wu_ref[...],
                       preferred_element_type=jnp.float32) + bu_ref[...]

    # -------- residual + LayerNorm1 (f32) --------
    y = _layernorm(attended + x, g1_ref[...], bt1_ref[...])

    # -------- feed-forward (bf16 matmuls, f32 elementwise) --------
    hdn = jnp.dot(y.astype(jnp.bfloat16), w1_ref[...],
                  preferred_element_type=jnp.float32) + b1_ref[...]
    hdn = jnp.maximum(hdn, 0.0)
    ff = jnp.dot(hdn.astype(jnp.bfloat16), w2_ref[...],
                 preferred_element_type=jnp.float32) + b2_ref[...]

    # -------- residual + LayerNorm2 (f32) --------
    z = _layernorm(ff + y, g2_ref[...], bt2_ref[...])

    o_ref[...] = z.reshape(bb, seq, e).astype(o_ref.dtype)


def transformer_block(x, params, *, heads):
    """x: (B, T, E) float32. Returns (B, T, E) float32."""
    b, t, e = x.shape
    # Keep at most 2 grid steps: >=2 so v7x's two TensorCores both get work
    # ("parallel" axis), while each step carries B/2 batch rows to amortize
    # the ~0.35us per-grid-step overhead (no effect on v5e/v6e single TC).
    num_blocks = 2 if (b >= 2 and b % 2 == 0) else 1
    bb = b // num_blocks

    kern = functools.partial(transformer_block_kernel,
                             heads=heads, emb=e, bb=bb, seq=t)

    def wspec(p):
        nd = p.ndim
        return pl.BlockSpec(p.shape, lambda i, _nd=nd: (0,) * _nd)

    in_specs = [pl.BlockSpec((bb, t, e), lambda i: (i, 0, 0))]
    in_specs += [wspec(p) for p in params]
    out_specs = pl.BlockSpec((bb, t, e), lambda i: (i, 0, 0))

    # Advisory cost estimate for XLA's scheduler.
    he = heads * e
    hidden = params[7].shape[1]
    n_rows = b * t
    flops = (
        3 * 2 * n_rows * e * he            # q, k, v projections
        + 2 * 2 * b * heads * t * t * e    # scores + p@v
        + 2 * n_rows * he * e              # unifyheads
        + 2 * n_rows * e * hidden          # ff1
        + 2 * n_rows * hidden * e          # ff2
    )
    transcendentals = b * heads * t * t + b * heads * t + 2 * n_rows
    bytes_accessed = int(sum(int(p.size) * p.dtype.itemsize for p in params)
                         + 2 * b * t * e * 4)
    cost = pl.CostEstimate(flops=int(flops),
                           transcendentals=int(transcendentals),
                           bytes_accessed=bytes_accessed)

    return pl.pallas_call(
        kern,
        out_shape=jax.ShapeDtypeStruct((b, t, e), jnp.float32),
        grid=(num_blocks,),
        in_specs=in_specs,
        out_specs=out_specs,
        compiler_params=pltpu.CompilerParams(
            dimension_semantics=("parallel",)),
        cost_estimate=cost,
    )(x, *params)


def make_params(key, emb, heads, ff_mult=4):
    """Deterministic synthetic parameters (shapes match the PyTorch module).

    Weight matrices are stored in bf16 (halves HBM->VMEM DMA bytes; MXU is
    bf16-native); biases / LayerNorm affines stay f32 (VPU path).
    """
    ks = jax.random.split(key, 8)
    he = heads * emb
    s = 0.2
    f32, bf16 = jnp.float32, jnp.bfloat16
    wq = (jax.random.normal(ks[0], (emb, he), f32) * s).astype(bf16)
    wk = (jax.random.normal(ks[1], (emb, he), f32) * s).astype(bf16)
    wv = (jax.random.normal(ks[2], (emb, he), f32) * s).astype(bf16)
    wu = (jax.random.normal(ks[3], (he, emb), f32) * s).astype(bf16)
    bu = jax.random.normal(ks[4], (1, emb), f32) * s
    g1 = jnp.ones((1, emb), f32)
    bt1 = jnp.zeros((1, emb), f32)
    w1 = (jax.random.normal(ks[5], (emb, ff_mult * emb), f32) * s).astype(bf16)
    b1 = jax.random.normal(ks[6], (1, ff_mult * emb), f32) * s
    w2 = (jax.random.normal(ks[7], (ff_mult * emb, emb), f32) * s).astype(bf16)
    b2 = jnp.zeros((1, emb), f32)
    g2 = jnp.ones((1, emb), f32)
    bt2 = jnp.zeros((1, emb), f32)
    return (wq, wk, wv, wu, bu, g1, bt1, w1, b1, w2, b2, g2, bt2)


def reference_block(x, params, *, heads):
    """Pure-JAX fp32 reference mirroring the PyTorch forward (mask=None, p_drop=0)."""
    wq, wk, wv, wu, bu, g1, bt1, w1, b1, w2, b2, g2, bt2 = [
        p.astype(jnp.float32) for p in params]
    b, t, e = x.shape
    q = (x @ wq).reshape(b, t, heads, e).transpose(0, 2, 1, 3) / (e ** 0.25)
    k = (x @ wk).reshape(b, t, heads, e).transpose(0, 2, 1, 3) / (e ** 0.25)
    v = (x @ wv).reshape(b, t, heads, e).transpose(0, 2, 1, 3)
    dot = jnp.einsum('bhqe,bhke->bhqk', q, k)
    p = jax.nn.softmax(dot, axis=-1)
    o = jnp.einsum('bhqk,bhke->bhqe', p, v).transpose(0, 2, 1, 3).reshape(
        b, t, heads * e)
    attended = o @ wu + bu[0]
    y = _layernorm(attended + x, g1[0], bt1[0])
    ff = jnp.maximum(y @ w1 + b1[0], 0.0) @ w2 + b2[0]
    return _layernorm(ff + y, g2[0], bt2[0])


if __name__ == "__main__":
    B, T, EMB, HEADS = 2, 8, 32, 2

    key = jax.random.PRNGKey(0)
    kx, kp = jax.random.split(key)
    x = jax.random.normal(kx, (B, T, EMB), jnp.float32)
    params = make_params(kp, EMB, HEADS)
    mask = None   # forward(x, mask): mask is passed through and returned

    out = transformer_block(x, params, heads=HEADS)
    out = jax.block_until_ready(out)

    ref = jax.block_until_ready(reference_block(x, params, heads=HEADS))
    diff = jnp.abs(out - ref)
    max_diff = float(jnp.max(diff))
    mean_diff = float(jnp.mean(diff))
    assert out.shape == (B, T, EMB)
    assert bool(jnp.all(jnp.isfinite(out)))
    # bf16 MXU inputs (f32 accumulation) + approx softmax reciprocal loosen the
    # tolerance vs the fp32 reference; outputs are LayerNorm'd (unit variance).
    assert max_diff < 1e-1, f"max mismatch vs reference: {max_diff}"
    assert mean_diff < 1.5e-2, f"mean mismatch vs reference: {mean_diff}"

    result = (out, mask)  # matches PyTorch return signature (x, mask)
    print("KERNEL_OK")
</pallas_src>

<mosaic_0001>
module attributes {stable_mosaic.version = 11 : i64} {
  func.func @transformer_block_kernel(%arg0: i32, %arg1: memref<1x8x32xf32, #tpu.memory_space<vmem>>, %arg2: memref<32x64xbf16, #tpu.memory_space<vmem>>, %arg3: memref<32x64xbf16, #tpu.memory_space<vmem>>, %arg4: memref<32x64xbf16, #tpu.memory_space<vmem>>, %arg5: memref<64x32xbf16, #tpu.memory_space<vmem>>, %arg6: memref<1x32xf32, #tpu.memory_space<vmem>>, %arg7: memref<1x32xf32, #tpu.memory_space<vmem>>, %arg8: memref<1x32xf32, #tpu.memory_space<vmem>>, %arg9: memref<32x128xbf16, #tpu.memory_space<vmem>>, %arg10: memref<1x128xf32, #tpu.memory_space<vmem>>, %arg11: memref<128x32xbf16, #tpu.memory_space<vmem>>, %arg12: memref<1x32xf32, #tpu.memory_space<vmem>>, %arg13: memref<1x32xf32, #tpu.memory_space<vmem>>, %arg14: memref<1x32xf32, #tpu.memory_space<vmem>>, %arg15: memref<1x8x32xf32, #tpu.memory_space<vmem>>) attributes {dimension_semantics = [#tpu.dimension_semantics<parallel>], iteration_bounds = array<i64: 2>, scalar_prefetch = 0 : i64, scratch_operands = 0 : i64, tpu.core_type = #tpu.core_type<tc>, window_params = [{transform_indices = @transform_0, window_bounds = array<i64: 1, 8, 32>}, {pipeline_mode = #tpu.pipeline_mode<synchronous>, transform_indices = @transform_1, window_bounds = array<i64: 32, 64>}, {pipeline_mode = #tpu.pipeline_mode<synchronous>, transform_indices = @transform_2, window_bounds = array<i64: 32, 64>}, {pipeline_mode = #tpu.pipeline_mode<synchronous>, transform_indices = @transform_3, window_bounds = array<i64: 32, 64>}, {pipeline_mode = #tpu.pipeline_mode<synchronous>, transform_indices = @transform_4, window_bounds = array<i64: 64, 32>}, {pipeline_mode = #tpu.pipeline_mode<synchronous>, transform_indices = @transform_5, window_bounds = array<i64: 1, 32>}, {pipeline_mode = #tpu.pipeline_mode<synchronous>, transform_indices = @transform_6, window_bounds = array<i64: 1, 32>}, {pipeline_mode = #tpu.pipeline_mode<synchronous>, transform_indices = @transform_7, window_bounds = array<i64: 1, 32>}, {pipeline_mode = #tpu.pipeline_mode<synchronous>, transform_indices = @transform_8, window_bounds = array<i64: 32, 128>}, {pipeline_mode = #tpu.pipeline_mode<synchronous>, transform_indices = @transform_9, window_bounds = array<i64: 1, 128>}, {pipeline_mode = #tpu.pipeline_mode<synchronous>, transform_indices = @transform_10, window_bounds = array<i64: 128, 32>}, {pipeline_mode = #tpu.pipeline_mode<synchronous>, transform_indices = @transform_11, window_bounds = array<i64: 1, 32>}, {pipeline_mode = #tpu.pipeline_mode<synchronous>, transform_indices = @transform_12, window_bounds = array<i64: 1, 32>}, {pipeline_mode = #tpu.pipeline_mode<synchronous>, transform_indices = @transform_13, window_bounds = array<i64: 1, 32>}, {transform_indices = @transform_14, window_bounds = array<i64: 1, 8, 32>}]} {
    %c0 = arith.constant 0 : index
    %c0_0 = arith.constant 0 : index
    %c0_1 = arith.constant 0 : index
    %0 = vector.load %arg1[%c0, %c0_0, %c0_1] : memref<1x8x32xf32, #tpu.memory_space<vmem>>, vector<1x8x32xf32>
    %1 = vector.shape_cast %0 : vector<1x8x32xf32> to vector<8x32xf32>
    %2 = arith.truncf %1 : vector<8x32xf32> to vector<8x32xbf16>
    %c0_2 = arith.constant 0 : index
    %c0_3 = arith.constant 0 : index
    %3 = vector.load %arg2[%c0_2, %c0_3] : memref<32x64xbf16, #tpu.memory_space<vmem>>, vector<32x64xbf16>
    %cst = arith.constant dense<0.000000e+00> : vector<8x64xf32>
    %4 = tpu.matmul %2, %3, %cst {dimension_numbers = #tpu.dot_dimension_numbers<[1], [0], [0], [1], [0, 0, 1, 1], [], []>} : vector<8x32xbf16>, vector<32x64xbf16>, vector<8x64xf32> -> vector<8x64xf32>
    %c0_4 = arith.constant 0 : index
    %c0_5 = arith.constant 0 : index
    %5 = vector.load %arg3[%c0_4, %c0_5] : memref<32x64xbf16, #tpu.memory_space<vmem>>, vector<32x64xbf16>
    %cst_6 = arith.constant dense<0.000000e+00> : vector<8x64xf32>
    %6 = tpu.matmul %2, %5, %cst_6 {dimension_numbers = #tpu.dot_dimension_numbers<[1], [0], [0], [1], [0, 0, 1, 1], [], []>} : vector<8x32xbf16>, vector<32x64xbf16>, vector<8x64xf32> -> vector<8x64xf32>
    %c0_7 = arith.constant 0 : index
    %c0_8 = arith.constant 0 : index
    %7 = vector.load %arg4[%c0_7, %c0_8] : memref<32x64xbf16, #tpu.memory_space<vmem>>, vector<32x64xbf16>
    %cst_9 = arith.constant dense<0.000000e+00> : vector<8x64xf32>
    %8 = tpu.matmul %2, %7, %cst_9 {dimension_numbers = #tpu.dot_dimension_numbers<[1], [0], [0], [1], [0, 0, 1, 1], [], []>} : vector<8x32xbf16>, vector<32x64xbf16>, vector<8x64xf32> -> vector<8x64xf32>
    %9 = vector.extract_strided_slice %4 {offsets = [0, 0], sizes = [8, 32], strides = [1, 1]} : vector<8x64xf32> to vector<8x32xf32>
    %10 = vector.shape_cast %9 : vector<8x32xf32> to vector<1x8x32xf32>
    %11 = arith.truncf %10 : vector<1x8x32xf32> to vector<1x8x32xbf16>
    %12 = vector.extract_strided_slice %6 {offsets = [0, 0], sizes = [8, 32], strides = [1, 1]} : vector<8x64xf32> to vector<8x32xf32>
    %13 = vector.shape_cast %12 : vector<8x32xf32> to vector<1x8x32xf32>
    %14 = arith.truncf %13 : vector<1x8x32xf32> to vector<1x8x32xbf16>
    %15 = vector.extract_strided_slice %8 {offsets = [0, 0], sizes = [8, 32], strides = [1, 1]} : vector<8x64xf32> to vector<8x32xf32>
    %16 = vector.shape_cast %15 : vector<8x32xf32> to vector<1x8x32xf32>
    %17 = arith.truncf %16 : vector<1x8x32xf32> to vector<1x8x32xbf16>
    "tpu.trace_start"() <{level = 10 : i32, message = "bqe,bke->bqk"}> : () -> ()
    %cst_10 = arith.constant dense<0.000000e+00> : vector<1x8x8xf32>
    %18 = tpu.matmul %11, %14, %cst_10 {dimension_numbers = #tpu.dot_dimension_numbers<[2], [2], [1], [1], [0, 0, 0, 1, 1, 1], [0], [0]>} : vector<1x8x32xbf16>, vector<1x8x32xbf16>, vector<1x8x8xf32> -> vector<1x8x8xf32>
    "tpu.trace_stop"() : () -> ()
    %cst_11 = arith.constant 0.176776692 : f32
    %19 = vector.broadcast %cst_11 : f32 to vector<1x8x8xf32>
    %20 = arith.mulf %18, %19 : vector<1x8x8xf32>
    %cst_12 = arith.constant dense<0xFF800000> : vector<1x8xf32>
    %21 = vector.multi_reduction <maximumf>, %20, %cst_12 [2] : vector<1x8x8xf32> to vector<1x8xf32>
    %22 = vector.shape_cast %21 : vector<1x8xf32> to vector<1x8x1xf32>
    %23 = vector.broadcast %22 : vector<1x8x1xf32> to vector<1x8x8xf32>
    %24 = arith.subf %20, %23 : vector<1x8x8xf32>
    %25 = math.exp %24 : vector<1x8x8xf32>
    %cst_13 = arith.constant dense<0.000000e+00> : vector<1x8xf32>
    %26 = vector.multi_reduction <add>, %25, %cst_13 [2] : vector<1x8x8xf32> to vector<1x8xf32>
    %27 = vector.shape_cast %26 : vector<1x8xf32> to vector<1x8x1xf32>
    %28 = tpu.reciprocal %27 {approx = true} : vector<1x8x1xf32> -> vector<1x8x1xf32>
    %29 = vector.broadcast %28 : vector<1x8x1xf32> to vector<1x8x8xf32>
    %30 = arith.mulf %25, %29 : vector<1x8x8xf32>
    %31 = arith.truncf %30 : vector<1x8x8xf32> to vector<1x8x8xbf16>
    "tpu.trace_start"() <{level = 10 : i32, message = "bqk,bke->bqe"}> : () -> ()
    %cst_14 = arith.constant dense<0.000000e+00> : vector<1x8x32xf32>
    %32 = tpu.matmul %31, %17, %cst_14 {dimension_numbers = #tpu.dot_dimension_numbers<[2], [1], [1], [2], [0, 0, 0, 1, 1, 2], [0], [0]>} : vector<1x8x8xbf16>, vector<1x8x32xbf16>, vector<1x8x32xf32> -> vector<1x8x32xf32>
    "tpu.trace_stop"() : () -> ()
    %33 = vector.shape_cast %32 : vector<1x8x32xf32> to vector<8x32xf32>
    %34 = vector.extract_strided_slice %4 {offsets = [0, 32], sizes = [8, 32], strides = [1, 1]} : vector<8x64xf32> to vector<8x32xf32>
    %35 = vector.shape_cast %34 : vector<8x32xf32> to vector<1x8x32xf32>
    %36 = arith.truncf %35 : vector<1x8x32xf32> to vector<1x8x32xbf16>
    %37 = vector.extract_strided_slice %6 {offsets = [0, 32], sizes = [8, 32], strides = [1, 1]} : vector<8x64xf32> to vector<8x32xf32>
    %38 = vector.shape_cast %37 : vector<8x32xf32> to vector<1x8x32xf32>
    %39 = arith.truncf %38 : vector<1x8x32xf32> to vector<1x8x32xbf16>
    %40 = vector.extract_strided_slice %8 {offsets = [0, 32], sizes = [8, 32], strides = [1, 1]} : vector<8x64xf32> to vector<8x32xf32>
    %41 = vector.shape_cast %40 : vector<8x32xf32> to vector<1x8x32xf32>
    %42 = arith.truncf %41 : vector<1x8x32xf32> to vector<1x8x32xbf16>
    "tpu.trace_start"() <{level = 10 : i32, message = "bqe,bke->bqk"}> : () -> ()
    %cst_15 = arith.constant dense<0.000000e+00> : vector<1x8x8xf32>
    %43 = tpu.matmul %36, %39, %cst_15 {dimension_numbers = #tpu.dot_dimension_numbers<[2], [2], [1], [1], [0, 0, 0, 1, 1, 1], [0], [0]>} : vector<1x8x32xbf16>, vector<1x8x32xbf16>, vector<1x8x8xf32> -> vector<1x8x8xf32>
    "tpu.trace_stop"() : () -> ()
    %cst_16 = arith.constant 0.176776692 : f32
    %44 = vector.broadcast %cst_16 : f32 to vector<1x8x8xf32>
    %45 = arith.mulf %43, %44 : vector<1x8x8xf32>
    %cst_17 = arith.constant dense<0xFF800000> : vector<1x8xf32>
    %46 = vector.multi_reduction <maximumf>, %45, %cst_17 [2] : vector<1x8x8xf32> to vector<1x8xf32>
    %47 = vector.shape_cast %46 : vector<1x8xf32> to vector<1x8x1xf32>
    %48 = vector.broadcast %47 : vector<1x8x1xf32> to vector<1x8x8xf32>
    %49 = arith.subf %45, %48 : vector<1x8x8xf32>
    %50 = math.exp %49 : vector<1x8x8xf32>
    %cst_18 = arith.constant dense<0.000000e+00> : vector<1x8xf32>
    %51 = vector.multi_reduction <add>, %50, %cst_18 [2] : vector<1x8x8xf32> to vector<1x8xf32>
    %52 = vector.shape_cast %51 : vector<1x8xf32> to vector<1x8x1xf32>
    %53 = tpu.reciprocal %52 {approx = true} : vector<1x8x1xf32> -> vector<1x8x1xf32>
    %54 = vector.broadcast %53 : vector<1x8x1xf32> to vector<1x8x8xf32>
    %55 = arith.mulf %50, %54 : vector<1x8x8xf32>
    %56 = arith.truncf %55 : vector<1x8x8xf32> to vector<1x8x8xbf16>
    "tpu.trace_start"() <{level = 10 : i32, message = "bqk,bke->bqe"}> : () -> ()
    %cst_19 = arith.constant dense<0.000000e+00> : vector<1x8x32xf32>
    %57 = tpu.matmul %56, %42, %cst_19 {dimension_numbers = #tpu.dot_dimension_numbers<[2], [1], [1], [2], [0, 0, 0, 1, 1, 2], [0], [0]>} : vector<1x8x8xbf16>, vector<1x8x32xbf16>, vector<1x8x32xf32> -> vector<1x8x32xf32>
    "tpu.trace_stop"() : () -> ()
    %58 = vector.shape_cast %57 : vector<1x8x32xf32> to vector<8x32xf32>
    %59 = tpu.concatenate %33, %58 in 1 : vector<8x32xf32>, vector<8x32xf32> -> vector<8x64xf32>
    %60 = arith.truncf %59 : vector<8x64xf32> to vector<8x64xbf16>
    %c0_20 = arith.constant 0 : index
    %c0_21 = arith.constant 0 : index
    %61 = vector.load %arg5[%c0_20, %c0_21] : memref<64x32xbf16, #tpu.memory_space<vmem>>, vector<64x32xbf16>
    %cst_22 = arith.constant dense<0.000000e+00> : vector<8x32xf32>
    %62 = tpu.matmul %60, %61, %cst_22 {dimension_numbers = #tpu.dot_dimension_numbers<[1], [0], [0], [1], [0, 0, 1, 1], [], []>} : vector<8x64xbf16>, vector<64x32xbf16>, vector<8x32xf32> -> vector<8x32xf32>
    %c0_23 = arith.constant 0 : index
    %c0_24 = arith.constant 0 : index
    %63 = vector.load %arg6[%c0_23, %c0_24] : memref<1x32xf32, #tpu.memory_space<vmem>>, vector<1x32xf32>
    %64 = vector.broadcast %63 : vector<1x32xf32> to vector<8x32xf32>
    %65 = arith.addf %62, %64 : vector<8x32xf32>
    %66 = arith.addf %65, %1 : vector<8x32xf32>
    %c0_25 = arith.constant 0 : index
    %c0_26 = arith.constant 0 : index
    %67 = vector.load %arg7[%c0_25, %c0_26] : memref<1x32xf32, #tpu.memory_space<vmem>>, vector<1x32xf32>
    %c0_27 = arith.constant 0 : index
    %c0_28 = arith.constant 0 : index
    %68 = vector.load %arg8[%c0_27, %c0_28] : memref<1x32xf32, #tpu.memory_space<vmem>>, vector<1x32xf32>
    %cst_29 = arith.constant dense<0.000000e+00> : vector<8xf32>
    %69 = vector.multi_reduction <add>, %66, %cst_29 [1] : vector<8x32xf32> to vector<8xf32>
    %70 = vector.shape_cast %69 : vector<8xf32> to vector<8x1xf32>
    %cst_30 = arith.constant 3.200000e+01 : f32
    %71 = vector.broadcast %cst_30 : f32 to vector<8x1xf32>
    %72 = arith.divf %70, %71 : vector<8x1xf32>
    %73 = vector.broadcast %72 : vector<8x1xf32> to vector<8x32xf32>
    %74 = arith.subf %66, %73 : vector<8x32xf32>
    %75 = arith.mulf %74, %74 : vector<8x32xf32>
    %cst_31 = arith.constant dense<0.000000e+00> : vector<8xf32>
    %76 = vector.multi_reduction <add>, %75, %cst_31 [1] : vector<8x32xf32> to vector<8xf32>
    %77 = vector.shape_cast %76 : vector<8xf32> to vector<8x1xf32>
    %cst_32 = arith.constant 3.200000e+01 : f32
    %78 = vector.broadcast %cst_32 : f32 to vector<8x1xf32>
    %79 = arith.divf %77, %78 : vector<8x1xf32>
    %80 = vector.broadcast %72 : vector<8x1xf32> to vector<8x32xf32>
    %81 = arith.subf %66, %80 : vector<8x32xf32>
    %cst_33 = arith.constant 9.99999974E-6 : f32
    %82 = vector.broadcast %cst_33 : f32 to vector<8x1xf32>
    %83 = arith.addf %79, %82 : vector<8x1xf32>
    %84 = math.rsqrt %83 : vector<8x1xf32>
    %85 = vector.broadcast %84 : vector<8x1xf32> to vector<8x32xf32>
    %86 = arith.mulf %81, %85 : vector<8x32xf32>
    %87 = vector.broadcast %67 : vector<1x32xf32> to vector<8x32xf32>
    %88 = arith.mulf %86, %87 : vector<8x32xf32>
    %89 = vector.broadcast %68 : vector<1x32xf32> to vector<8x32xf32>
    %90 = arith.addf %88, %89 : vector<8x32xf32>
    %91 = arith.truncf %90 : vector<8x32xf32> to vector<8x32xbf16>
    %c0_34 = arith.constant 0 : index
    %c0_35 = arith.constant 0 : index
    %92 = vector.load %arg9[%c0_34, %c0_35] : memref<32x128xbf16, #tpu.memory_space<vmem>>, vector<32x128xbf16>
    %cst_36 = arith.constant dense<0.000000e+00> : vector<8x128xf32>
    %93 = tpu.matmul %91, %92, %cst_36 {dimension_numbers = #tpu.dot_dimension_numbers<[1], [0], [0], [1], [0, 0, 1, 1], [], []>} : vector<8x32xbf16>, vector<32x128xbf16>, vector<8x128xf32> -> vector<8x128xf32>
    %c0_37 = arith.constant 0 : index
    %c0_38 = arith.constant 0 : index
    %94 = vector.load %arg10[%c0_37, %c0_38] : memref<1x128xf32, #tpu.memory_space<vmem>>, vector<1x128xf32>
    %95 = vector.broadcast %94 : vector<1x128xf32> to vector<8x128xf32>
    %96 = arith.addf %93, %95 : vector<8x128xf32>
    %cst_39 = arith.constant 0.000000e+00 : f32
    %97 = vector.broadcast %cst_39 : f32 to vector<8x128xf32>
    %98 = arith.maximumf %96, %97 : vector<8x128xf32>
    %99 = arith.truncf %98 : vector<8x128xf32> to vector<8x128xbf16>
    %c0_40 = arith.constant 0 : index
    %c0_41 = arith.constant 0 : index
    %100 = vector.load %arg11[%c0_40, %c0_41] : memref<128x32xbf16, #tpu.memory_space<vmem>>, vector<128x32xbf16>
    %cst_42 = arith.constant dense<0.000000e+00> : vector<8x32xf32>
    %101 = tpu.matmul %99, %100, %cst_42 {dimension_numbers = #tpu.dot_dimension_numbers<[1], [0], [0], [1], [0, 0, 1, 1], [], []>} : vector<8x128xbf16>, vector<128x32xbf16>, vector<8x32xf32> -> vector<8x32xf32>
    %c0_43 = arith.constant 0 : index
    %c0_44 = arith.constant 0 : index
    %102 = vector.load %arg12[%c0_43, %c0_44] : memref<1x32xf32, #tpu.memory_space<vmem>>, vector<1x32xf32>
    %103 = vector.broadcast %102 : vector<1x32xf32> to vector<8x32xf32>
    %104 = arith.addf %101, %103 : vector<8x32xf32>
    %105 = arith.addf %104, %90 : vector<8x32xf32>
    %c0_45 = arith.constant 0 : index
    %c0_46 = arith.constant 0 : index
    %106 = vector.load %arg13[%c0_45, %c0_46] : memref<1x32xf32, #tpu.memory_space<vmem>>, vector<1x32xf32>
    %c0_47 = arith.constant 0 : index
    %c0_48 = arith.constant 0 : index
    %107 = vector.load %arg14[%c0_47, %c0_48] : memref<1x32xf32, #tpu.memory_space<vmem>>, vector<1x32xf32>
    %cst_49 = arith.constant dense<0.000000e+00> : vector<8xf32>
    %108 = vector.multi_reduction <add>, %105, %cst_49 [1] : vector<8x32xf32> to vector<8xf32>
    %109 = vector.shape_cast %108 : vector<8xf32> to vector<8x1xf32>
    %cst_50 = arith.constant 3.200000e+01 : f32
    %110 = vector.broadcast %cst_50 : f32 to vector<8x1xf32>
    %111 = arith.divf %109, %110 : vector<8x1xf32>
    %112 = vector.broadcast %111 : vector<8x1xf32> to vector<8x32xf32>
    %113 = arith.subf %105, %112 : vector<8x32xf32>
    %114 = arith.mulf %113, %113 : vector<8x32xf32>
    %cst_51 = arith.constant dense<0.000000e+00> : vector<8xf32>
    %115 = vector.multi_reduction <add>, %114, %cst_51 [1] : vector<8x32xf32> to vector<8xf32>
    %116 = vector.shape_cast %115 : vector<8xf32> to vector<8x1xf32>
    %cst_52 = arith.constant 3.200000e+01 : f32
    %117 = vector.broadcast %cst_52 : f32 to vector<8x1xf32>
    %118 = arith.divf %116, %117 : vector<8x1xf32>
    %119 = vector.broadcast %111 : vector<8x1xf32> to vector<8x32xf32>
    %120 = arith.subf %105, %119 : vector<8x32xf32>
    %cst_53 = arith.constant 9.99999974E-6 : f32
    %121 = vector.broadcast %cst_53 : f32 to vector<8x1xf32>
    %122 = arith.addf %118, %121 : vector<8x1xf32>
    %123 = math.rsqrt %122 : vector<8x1xf32>
    %124 = vector.broadcast %123 : vector<8x1xf32> to vector<8x32xf32>
    %125 = arith.mulf %120, %124 : vector<8x32xf32>
    %126 = vector.broadcast %106 : vector<1x32xf32> to vector<8x32xf32>
    %127 = arith.mulf %125, %126 : vector<8x32xf32>
    %128 = vector.broadcast %107 : vector<1x32xf32> to vector<8x32xf32>
    %129 = arith.addf %127, %128 : vector<8x32xf32>
    %130 = vector.shape_cast %129 : vector<8x32xf32> to vector<1x8x32xf32>
    %c0_54 = arith.constant 0 : index
    %c0_55 = arith.constant 0 : index
    %c0_56 = arith.constant 0 : index
    %131 = vector.load %arg15[%c0_54, %c0_55, %c0_56] : memref<1x8x32xf32, #tpu.memory_space<vmem>>, vector<1x8x32xf32>
    tpu.vector_store %arg15[%c0_54, %c0_55, %c0_56], %130 {strides = array<i32>} : memref<1x8x32xf32, #tpu.memory_space<vmem>>, vector<1x8x32xf32>,
    return
  }
  func.func @transform_0(%arg0: i32) -> (i32, i32, i32) {
    %c0_i32 = arith.constant 0 : i32
    %c0_i32_0 = arith.constant 0 : i32
    %c0_i32_1 = arith.constant 0 : i32
    return %arg0, %c0_i32, %c0_i32_0 : i32, i32, i32
  }
  func.func @transform_1(%arg0: i32) -> (i32, i32) {
    %c0_i32 = arith.constant 0 : i32
    %c0_i32_0 = arith.constant 0 : i32
    %c0_i32_1 = arith.constant 0 : i32
    return %c0_i32, %c0_i32_0 : i32, i32
  }
  func.func @transform_2(%arg0: i32) -> (i32, i32) {
    %c0_i32 = arith.constant 0 : i32
    %c0_i32_0 = arith.constant 0 : i32
    %c0_i32_1 = arith.constant 0 : i32
    return %c0_i32, %c0_i32_0 : i32, i32
  }
  func.func @transform_3(%arg0: i32) -> (i32, i32) {
    %c0_i32 = arith.constant 0 : i32
    %c0_i32_0 = arith.constant 0 : i32
    %c0_i32_1 = arith.constant 0 : i32
    return %c0_i32, %c0_i32_0 : i32, i32
  }
  func.func @transform_4(%arg0: i32) -> (i32, i32) {
    %c0_i32 = arith.constant 0 : i32
    %c0_i32_0 = arith.constant 0 : i32
    %c0_i32_1 = arith.constant 0 : i32
    return %c0_i32, %c0_i32_0 : i32, i32
  }
  func.func @transform_5(%arg0: i32) -> (i32, i32) {
    %c0_i32 = arith.constant 0 : i32
    %c0_i32_0 = arith.constant 0 : i32
    %c0_i32_1 = arith.constant 0 : i32
    return %c0_i32, %c0_i32_0 : i32, i32
  }
  func.func @transform_6(%arg0: i32) -> (i32, i32) {
    %c0_i32 = arith.constant 0 : i32
    %c0_i32_0 = arith.constant 0 : i32
    %c0_i32_1 = arith.constant 0 : i32
    return %c0_i32, %c0_i32_0 : i32, i32
  }
  func.func @transform_7(%arg0: i32) -> (i32, i32) {
    %c0_i32 = arith.constant 0 : i32
    %c0_i32_0 = arith.constant 0 : i32
    %c0_i32_1 = arith.constant 0 : i32
    return %c0_i32, %c0_i32_0 : i32, i32
  }
  func.func @transform_8(%arg0: i32) -> (i32, i32) {
    %c0_i32 = arith.constant 0 : i32
    %c0_i32_0 = arith.constant 0 : i32
    %c0_i32_1 = arith.constant 0 : i32
    return %c0_i32, %c0_i32_0 : i32, i32
  }
  func.func @transform_9(%arg0: i32) -> (i32, i32) {
    %c0_i32 = arith.constant 0 : i32
    %c0_i32_0 = arith.constant 0 : i32
    %c0_i32_1 = arith.constant 0 : i32
    return %c0_i32, %c0_i32_0 : i32, i32
  }
  func.func @transform_10(%arg0: i32) -> (i32, i32) {
    %c0_i32 = arith.constant 0 : i32
    %c0_i32_0 = arith.constant 0 : i32
    %c0_i32_1 = arith.constant 0 : i32
    return %c0_i32, %c0_i32_0 : i32, i32
  }
  func.func @transform_11(%arg0: i32) -> (i32, i32) {
    %c0_i32 = arith.constant 0 : i32
    %c0_i32_0 = arith.constant 0 : i32
    %c0_i32_1 = arith.constant 0 : i32
    return %c0_i32, %c0_i32_0 : i32, i32
  }
  func.func @transform_12(%arg0: i32) -> (i32, i32) {
    %c0_i32 = arith.constant 0 : i32
    %c0_i32_0 = arith.constant 0 : i32
    %c0_i32_1 = arith.constant 0 : i32
    return %c0_i32, %c0_i32_0 : i32, i32
  }
  func.func @transform_13(%arg0: i32) -> (i32, i32) {
    %c0_i32 = arith.constant 0 : i32
    %c0_i32_0 = arith.constant 0 : i32
    %c0_i32_1 = arith.constant 0 : i32
    return %c0_i32, %c0_i32_0 : i32, i32
  }
  func.func @transform_14(%arg0: i32) -> (i32, i32, i32) {
    %c0_i32 = arith.constant 0 : i32
    %c0_i32_0 = arith.constant 0 : i32
    %c0_i32_1 = arith.constant 0 : i32
    return %arg0, %c0_i32, %c0_i32_0 : i32, i32, i32
  }
}

</mosaic_0001>

<llo_original>
// kernel: tpu_custom_call.1
$region0: #{tpu_custom_call.1}
  #allocation0 [shape = 'u32[]', space=smem, size = 0x4, offset = 0x4, fixed_abs, tag = 'smem constant byte address 0x4 - core index']
  #allocation1 [shape = 'u32[144,128]{1,0:T(1,128)}', space=vmem, size = 0x12000, scoped, tag = 'internal scratch']
  %s0 = inlined_call_operand.vmem [shape: f32[2,8,32], index: 0, kind: input, shape index: {}]
  %s1 = inlined_call_operand.vmem [shape: bf16[32,64], index: 1, kind: input, shape index: {}]
  %s2 = inlined_call_operand.vmem [shape: bf16[32,64], index: 2, kind: input, shape index: {}]
  %s3 = inlined_call_operand.vmem [shape: bf16[32,64], index: 3, kind: input, shape index: {}]
  %s4 = inlined_call_operand.vmem [shape: bf16[64,32], index: 4, kind: input, shape index: {}]
  %s5 = inlined_call_operand.vmem [shape: f32[1,32], index: 5, kind: input, shape index: {}]
  %s6 = inlined_call_operand.vmem [shape: f32[1,32], index: 6, kind: input, shape index: {}]
  %s7 = inlined_call_operand.vmem [shape: f32[1,32], index: 7, kind: input, shape index: {}]
  %s8 = inlined_call_operand.vmem [shape: bf16[32,128], index: 8, kind: input, shape index: {}]
  %s9 = inlined_call_operand.vmem [shape: f32[1,128], index: 9, kind: input, shape index: {}]
  %s10 = inlined_call_operand.vmem [shape: bf16[128,32], index: 10, kind: input, shape index: {}]
  %s11 = inlined_call_operand.vmem [shape: f32[1,32], index: 11, kind: input, shape index: {}]
  %s12 = inlined_call_operand.vmem [shape: f32[1,32], index: 12, kind: input, shape index: {}]
  %s13 = inlined_call_operand.vmem [shape: f32[1,32], index: 13, kind: input, shape index: {}]
  %s14 = inlined_call_operand.hbm [shape: f32[2,8,32], index: 14, kind: output, shape index: {}]
  %s15 = sld [smem:[#allocation0]]
  $region89: #{tpu_custom_call.1} parent=0
    _
  %s17 = ssub.s32 1, %s15
  %s18 = scalar_select 0, %s17, %s15
  $region1: #{tpu_custom_call.1} parent=0
    #allocation2 [shape = 'u8[8192]{0}', space=vmem, size = 0x2000, scoped, tag = 'output window, operand 0']
    #allocation3 [shape = 's32[2]{0}', space=sflag, size = 0x8, scoped, tag = 'scoped memory for tpu_custom_call.1']
    %19 = vsyncpa [#allocation3], 0
    %s20 = scalar_lea.sflag [#allocation3], 1
    %21 = vsyncpa %s20, 0
    loop: start=0, step=1, limit=4
    $region2: #{tpu_custom_call.1} parent=1 // loop_pre_header
      _
    $region3: #{tpu_custom_call.1} parent=1 // loop_header
      %s23 = sphi 0, %s27
      %p24 = scmp.ge.s32.totalorder %s23, 4
      %s33 = sphi 0, %s35
      %s36 = sphi 0, %s33
      %s37 = sphi 0, %s36
      %s53 = sphi 0, %s37
      %s57 = sphi 0, %s57
      %s59 = sphi 0, %s57
      %s60 = sphi 0, %s59
      %s74 = sphi 0, %s60
      %s78 = sphi 0, %s78
      %s80 = sphi 0, %s78
      %s81 = sphi 0, %s80
      %s95 = sphi 0, %s81
      %s99 = sphi 0, %s99
      %s101 = sphi 0, %s99
      %s102 = sphi 0, %s101
      %s116 = sphi 0, %s102
      %s120 = sphi 0, %s120
      %s122 = sphi 0, %s120
      %s123 = sphi 0, %s122
      %s137 = sphi 0, %s123
      %s141 = sphi 0, %s141
      %s143 = sphi 0, %s141
      %s144 = sphi 0, %s143
      %s158 = sphi 0, %s144
      %s162 = sphi 0, %s162
      %s164 = sphi 0, %s162
      %s165 = sphi 0, %s164
      %s179 = sphi 0, %s165
      %s183 = sphi 0, %s183
      %s185 = sphi 0, %s183
      %s186 = sphi 0, %s185
      %s200 = sphi 0, %s186
      %s204 = sphi 0, %s204
      %s206 = sphi 0, %s204
      %s207 = sphi 0, %s206
      %s221 = sphi 0, %s207
      %s225 = sphi 0, %s225
      %s227 = sphi 0, %s225
      %s228 = sphi 0, %s227
      %s242 = sphi 0, %s228
      %s246 = sphi 0, %s246
      %s248 = sphi 0, %s246
      %s249 = sphi 0, %s248
      %s263 = sphi 0, %s249
      %s267 = sphi 0, %s267
      %s269 = sphi 0, %s267
      %s270 = sphi 0, %s269
      %s284 = sphi 0, %s270
      %s288 = sphi 0, %s288
      %s290 = sphi 0, %s288
      %s291 = sphi 0, %s290
      %s305 = sphi 0, %s291
      %s309 = sphi 0, %s309
      %s311 = sphi 0, %s309
      %s312 = sphi 0, %s311
      %s326 = sphi 0, %s312
      %s332 = sphi 0, %s334
      %s335 = sphi 0, %s332
      %s336 = sphi 0, %s335
      %s352 = sphi 0, %s336
    $region4: #{tpu_custom_call.1} parent=1 // loop_header_branch
      %26 = sbr.rel (%p24) target = $region8
    $region5: #{tpu_custom_call.1} parent=1 // loop_body
      %s28 = ssub.s32 %s23, 1
      %s29 = ssub.s32 %s23, 2
      %s30 = sadd.s32 %s23, 1
      %s31 = ssub.s32 %s23, %s30
      %p32 = scmp.eq.s32.totalorder %s31, 0
      %s34 = sadd.s32 %s33, 1
      %s35 = scalar_select %p32, %s33, %s34
      %p38 = pneg %p32
      %p39 = scmp.eq.s32.totalorder %s23, 1
      %p40 = por %p38, %p39
      %p41 = scmp.ne.s32.totalorder %s33, %s36
      %p42 = scmp.eq.s32.totalorder %s23, 0
      %p43 = por %p41, %p42
      %p44 = scmp.ne.s32.totalorder %s33, %s36
      %p45 = scmp.eq.s32.totalorder %s28, 1
      %p46 = por %p44, %p45
      %p47 = scmp.ne.s32.totalorder %s36, %s37
      %p48 = scmp.eq.s32.totalorder %s28, 0
      %p49 = por %p47, %p48
      %p50 = scmp.ne.s32.totalorder %s36, %s37
      %p51 = scmp.eq.s32.totalorder %s29, 1
      %p52 = por %p50, %p51
      %p54 = scmp.ne.s32.totalorder %s37, %s53
      %p55 = scmp.eq.s32.totalorder %s29, 0
      %p56 = por %p54, %p55
      %s58 = sadd.s32 %s57, 1
      %p61 = scmp.eq.s32.totalorder %s23, 1
      %p62 = scmp.ne.s32.totalorder %s57, %s59
      %p63 = scmp.eq.s32.totalorder %s23, 0
      %p64 = por %p62, %p63
      %p65 = scmp.ne.s32.totalorder %s57, %s59
      %p66 = scmp.eq.s32.totalorder %s28, 1
      %p67 = por %p65, %p66
      %p68 = scmp.ne.s32.totalorder %s59, %s60
      %p69 = scmp.eq.s32.totalorder %s28, 0
      %p70 = por %p68, %p69
      %p71 = scmp.ne.s32.totalorder %s59, %s60
      %p72 = scmp.eq.s32.totalorder %s29, 1
      %p73 = por %p71, %p72
      %p75 = scmp.ne.s32.totalorder %s60, %s74
      %p76 = scmp.eq.s32.totalorder %s29, 0
      %p77 = por %p75, %p76
      %s79 = sadd.s32 %s78, 1
      %p82 = scmp.eq.s32.totalorder %s23, 1
      %p83 = scmp.ne.s32.totalorder %s78, %s80
      %p84 = scmp.eq.s32.totalorder %s23, 0
      %p85 = por %p83, %p84
      %p86 = scmp.ne.s32.totalorder %s78, %s80
      %p87 = scmp.eq.s32.totalorder %s28, 1
      %p88 = por %p86, %p87
      %p89 = scmp.ne.s32.totalorder %s80, %s81
      %p90 = scmp.eq.s32.totalorder %s28, 0
      %p91 = por %p89, %p90
      %p92 = scmp.ne.s32.totalorder %s80, %s81
      %p93 = scmp.eq.s32.totalorder %s29, 1
      %p94 = por %p92, %p93
      %p96 = scmp.ne.s32.totalorder %s81, %s95
      %p97 = scmp.eq.s32.totalorder %s29, 0
      %p98 = por %p96, %p97
      %s100 = sadd.s32 %s99, 1
      %p103 = scmp.eq.s32.totalorder %s23, 1
      %p104 = scmp.ne.s32.totalorder %s99, %s101
      %p105 = scmp.eq.s32.totalorder %s23, 0
      %p106 = por %p104, %p105
      %p107 = scmp.ne.s32.totalorder %s99, %s101
      %p108 = scmp.eq.s32.totalorder %s28, 1
      %p109 = por %p107, %p108
      %p110 = scmp.ne.s32.totalorder %s101, %s102
      %p111 = scmp.eq.s32.totalorder %s28, 0
      %p112 = por %p110, %p111
      %p113 = scmp.ne.s32.totalorder %s101, %s102
      %p114 = scmp.eq.s32.totalorder %s29, 1
      %p115 = por %p113, %p114
      %p117 = scmp.ne.s32.totalorder %s102, %s116
      %p118 = scmp.eq.s32.totalorder %s29, 0
      %p119 = por %p117, %p118
      %s121 = sadd.s32 %s120, 1
      %p124 = scmp.eq.s32.totalorder %s23, 1
      %p125 = scmp.ne.s32.totalorder %s120, %s122
      %p126 = scmp.eq.s32.totalorder %s23, 0
      %p127 = por %p125, %p126
      %p128 = scmp.ne.s32.totalorder %s120, %s122
      %p129 = scmp.eq.s32.totalorder %s28, 1
      %p130 = por %p128, %p129
      %p131 = scmp.ne.s32.totalorder %s122, %s123
      %p132 = scmp.eq.s32.totalorder %s28, 0
      %p133 = por %p131, %p132
      %p134 = scmp.ne.s32.totalorder %s122, %s123
      %p135 = scmp.eq.s32.totalorder %s29, 1
      %p136 = por %p134, %p135
      %p138 = scmp.ne.s32.totalorder %s123, %s137
      %p139 = scmp.eq.s32.totalorder %s29, 0
      %p140 = por %p138, %p139
      %s142 = sadd.s32 %s141, 1
      %p145 = scmp.eq.s32.totalorder %s23, 1
      %p146 = scmp.ne.s32.totalorder %s141, %s143
      %p147 = scmp.eq.s32.totalorder %s23, 0
      %p148 = por %p146, %p147
      %p149 = scmp.ne.s32.totalorder %s141, %s143
      %p150 = scmp.eq.s32.totalorder %s28, 1
      %p151 = por %p149, %p150
      %p152 = scmp.ne.s32.totalorder %s143, %s144
      %p153 = scmp.eq.s32.totalorder %s28, 0
      %p154 = por %p152, %p153
      %p155 = scmp.ne.s32.totalorder %s143, %s144
      %p156 = scmp.eq.s32.totalorder %s29, 1
      %p157 = por %p155, %p156
      %p159 = scmp.ne.s32.totalorder %s144, %s158
      %p160 = scmp.eq.s32.totalorder %s29, 0
      %p161 = por %p159, %p160
      %s163 = sadd.s32 %s162, 1
      %p166 = scmp.eq.s32.totalorder %s23, 1
      %p167 = scmp.ne.s32.totalorder %s162, %s164
      %p168 = scmp.eq.s32.totalorder %s23, 0
      %p169 = por %p167, %p168
      %p170 = scmp.ne.s32.totalorder %s162, %s164
      %p171 = scmp.eq.s32.totalorder %s28, 1
      %p172 = por %p170, %p171
      %p173 = scmp.ne.s32.totalorder %s164, %s165
      %p174 = scmp.eq.s32.totalorder %s28, 0
      %p175 = por %p173, %p174
      %p176 = scmp.ne.s32.totalorder %s164, %s165
      %p177 = scmp.eq.s32.totalorder %s29, 1
      %p178 = por %p176, %p177
      %p180 = scmp.ne.s32.totalorder %s165, %s179
      %p181 = scmp.eq.s32.totalorder %s29, 0
      %p182 = por %p180, %p181
      %s184 = sadd.s32 %s183, 1
      %p187 = scmp.eq.s32.totalorder %s23, 1
      %p188 = scmp.ne.s32.totalorder %s183, %s185
      %p189 = scmp.eq.s32.totalorder %s23, 0
      %p190 = por %p188, %p189
      %p191 = scmp.ne.s32.totalorder %s183, %s185
      %p192 = scmp.eq.s32.totalorder %s28, 1
      %p193 = por %p191, %p192
      %p194 = scmp.ne.s32.totalorder %s185, %s186
      %p195 = scmp.eq.s32.totalorder %s28, 0
      %p196 = por %p194, %p195
      %p197 = scmp.ne.s32.totalorder %s185, %s186
      %p198 = scmp.eq.s32.totalorder %s29, 1
      %p199 = por %p197, %p198
      %p201 = scmp.ne.s32.totalorder %s186, %s200
      %p202 = scmp.eq.s32.totalorder %s29, 0
      %p203 = por %p201, %p202
      %s205 = sadd.s32 %s204, 1
      %p208 = scmp.eq.s32.totalorder %s23, 1
      %p209 = scmp.ne.s32.totalorder %s204, %s206
      %p210 = scmp.eq.s32.totalorder %s23, 0
      %p211 = por %p209, %p210
      %p212 = scmp.ne.s32.totalorder %s204, %s206
      %p213 = scmp.eq.s32.totalorder %s28, 1
      %p214 = por %p212, %p213
      %p215 = scmp.ne.s32.totalorder %s206, %s207
      %p216 = scmp.eq.s32.totalorder %s28, 0
      %p217 = por %p215, %p216
      %p218 = scmp.ne.s32.totalorder %s206, %s207
      %p219 = scmp.eq.s32.totalorder %s29, 1
      %p220 = por %p218, %p219
      %p222 = scmp.ne.s32.totalorder %s207, %s221
      %p223 = scmp.eq.s32.totalorder %s29, 0
      %p224 = por %p222, %p223
      %s226 = sadd.s32 %s225, 1
      %p229 = scmp.eq.s32.totalorder %s23, 1
      %p230 = scmp.ne.s32.totalorder %s225, %s227
      %p231 = scmp.eq.s32.totalorder %s23, 0
      %p232 = por %p230, %p231
      %p233 = scmp.ne.s32.totalorder %s225, %s227
      %p234 = scmp.eq.s32.totalorder %s28, 1
      %p235 = por %p233, %p234
      %p236 = scmp.ne.s32.totalorder %s227, %s228
      %p237 = scmp.eq.s32.totalorder %s28, 0
      %p238 = por %p236, %p237
      %p239 = scmp.ne.s32.totalorder %s227, %s228
      %p240 = scmp.eq.s32.totalorder %s29, 1
      %p241 = por %p239, %p240
      %p243 = scmp.ne.s32.totalorder %s228, %s242
      %p244 = scmp.eq.s32.totalorder %s29, 0
      %p245 = por %p243, %p244
      %s247 = sadd.s32 %s246, 1
      %p250 = scmp.eq.s32.totalorder %s23, 1
      %p251 = scmp.ne.s32.totalorder %s246, %s248
      %p252 = scmp.eq.s32.totalorder %s23, 0
      %p253 = por %p251, %p252
      %p254 = scmp.ne.s32.totalorder %s246, %s248
      %p255 = scmp.eq.s32.totalorder %s28, 1
      %p256 = por %p254, %p255
      %p257 = scmp.ne.s32.totalorder %s248, %s249
      %p258 = scmp.eq.s32.totalorder %s28, 0
      %p259 = por %p257, %p258
      %p260 = scmp.ne.s32.totalorder %s248, %s249
      %p261 = scmp.eq.s32.totalorder %s29, 1
      %p262 = por %p260, %p261
      %p264 = scmp.ne.s32.totalorder %s249, %s263
      %p265 = scmp.eq.s32.totalorder %s29, 0
      %p266 = por %p264, %p265
      %s268 = sadd.s32 %s267, 1
      %p271 = scmp.eq.s32.totalorder %s23, 1
      %p272 = scmp.ne.s32.totalorder %s267, %s269
      %p273 = scmp.eq.s32.totalorder %s23, 0
      %p274 = por %p272, %p273
      %p275 = scmp.ne.s32.totalorder %s267, %s269
      %p276 = scmp.eq.s32.totalorder %s28, 1
      %p277 = por %p275, %p276
      %p278 = scmp.ne.s32.totalorder %s269, %s270
      %p279 = scmp.eq.s32.totalorder %s28, 0
      %p280 = por %p278, %p279
      %p281 = scmp.ne.s32.totalorder %s269, %s270
      %p282 = scmp.eq.s32.totalorder %s29, 1
      %p283 = por %p281, %p282
      %p285 = scmp.ne.s32.totalorder %s270, %s284
      %p286 = scmp.eq.s32.totalorder %s29, 0
      %p287 = por %p285, %p286
      %s289 = sadd.s32 %s288, 1
      %p292 = scmp.eq.s32.totalorder %s23, 1
      %p293 = scmp.ne.s32.totalorder %s288, %s290
      %p294 = scmp.eq.s32.totalorder %s23, 0
      %p295 = por %p293, %p294
      %p296 = scmp.ne.s32.totalorder %s288, %s290
      %p297 = scmp.eq.s32.totalorder %s28, 1
      %p298 = por %p296, %p297
      %p299 = scmp.ne.s32.totalorder %s290, %s291
      %p300 = scmp.eq.s32.totalorder %s28, 0
      %p301 = por %p299, %p300
      %p302 = scmp.ne.s32.totalorder %s290, %s291
      %p303 = scmp.eq.s32.totalorder %s29, 1
      %p304 = por %p302, %p303
      %p306 = scmp.ne.s32.totalorder %s291, %s305
      %p307 = scmp.eq.s32.totalorder %s29, 0
      %p308 = por %p306, %p307
      %s310 = sadd.s32 %s309, 1
      %p313 = scmp.eq.s32.totalorder %s23, 1
      %p314 = scmp.ne.s32.totalorder %s309, %s311
      %p315 = scmp.eq.s32.totalorder %s23, 0
      %p316 = por %p314, %p315
      %p317 = scmp.ne.s32.totalorder %s309, %s311
      %p318 = scmp.eq.s32.totalorder %s28, 1
      %p319 = por %p317, %p318
      %p320 = scmp.ne.s32.totalorder %s311, %s312
      %p321 = scmp.eq.s32.totalorder %s28, 0
      %p322 = por %p320, %p321
      %p323 = scmp.ne.s32.totalorder %s311, %s312
      %p324 = scmp.eq.s32.totalorder %s29, 1
      %p325 = por %p323, %p324
      %p327 = scmp.ne.s32.totalorder %s312, %s326
      %p328 = scmp.eq.s32.totalorder %s29, 0
      %p329 = por %p327, %p328
      %s330 = ssub.s32 %s23, %s30
      %p331 = scmp.eq.s32.totalorder %s330, 0
      %s333 = sadd.s32 %s332, 1
      %s334 = scalar_select %p331, %s332, %s333
      %p337 = pneg %p331
      %p338 = scmp.eq.s32.totalorder %s23, 1
      %p339 = por %p337, %p338
      %p340 = scmp.ne.s32.totalorder %s332, %s335
      %p341 = scmp.eq.s32.totalorder %s23, 0
      %p342 = por %p340, %p341
      %p343 = scmp.ne.s32.totalorder %s332, %s335
      %p344 = scmp.eq.s32.totalorder %s28, 1
      %p345 = por %p343, %p344
      %p346 = scmp.ne.s32.totalorder %s335, %s336
      %p347 = scmp.eq.s32.totalorder %s28, 0
      %p348 = por %p346, %p347
      %p349 = scmp.ne.s32.totalorder %s335, %s336
      %p350 = scmp.eq.s32.totalorder %s29, 1
      %p351 = por %p349, %p350
      %p353 = scmp.ne.s32.totalorder %s336, %s352
      %p354 = scmp.eq.s32.totalorder %s29, 0
      %p355 = por %p353, %p354
      %p356 = scmp.le.s32.totalorder 1, %s23
      %p357 = scmp.lt.s32.totalorder %s23, 3
      %p358 = pnand %p356, %p357
      %p359 = pneg %p358
      // Predicated region
      $region9: #{tpu_custom_call.1} parent=5 // pred_check
        _
      $region10: #{tpu_custom_call.1} parent=5 // pred_check_branch
        %361 = sbr.rel (%p358) target = $region12
      $region11: #{tpu_custom_call.1} parent=5 // pred_region
        %s362 = ssub.s32 %s23, 1
        // Predicated region
        $region13: #{tpu_custom_call.1} parent=11 // pred_check
          %p363 = pneg %p70
        $region14: #{tpu_custom_call.1} parent=11 // pred_check_branch
          %365 = sbr.rel (%p363) target = $region16
        $region15: #{tpu_custom_call.1} parent=11 // pred_region
          _
        $region16: #{tpu_custom_call.1} parent=11 // pred_fallthru
          _
        // Predicated region
        $region17: #{tpu_custom_call.1} parent=11 // pred_check
          %p366 = pneg %p91
        $region18: #{tpu_custom_call.1} parent=11 // pred_check_branch
          %368 = sbr.rel (%p366) target = $region20
        $region19: #{tpu_custom_call.1} parent=11 // pred_region
          _
        $region20: #{tpu_custom_call.1} parent=11 // pred_fallthru
          _
        // Predicated region
        $region21: #{tpu_custom_call.1} parent=11 // pred_check
          %p369 = pneg %p112
        $region22: #{tpu_custom_call.1} parent=11 // pred_check_branch
          %371 = sbr.rel (%p369) target = $region24
        $region23: #{tpu_custom_call.1} parent=11 // pred_region
          _
        $region24: #{tpu_custom_call.1} parent=11 // pred_fallthru
          _
        // Predicated region
        $region25: #{tpu_custom_call.1} parent=11 // pred_check
          %p372 = pneg %p133
        $region26: #{tpu_custom_call.1} parent=11 // pred_check_branch
          %374 = sbr.rel (%p372) target = $region28
        $region27: #{tpu_custom_call.1} parent=11 // pred_region
          _
        $region28: #{tpu_custom_call.1} parent=11 // pred_fallthru
          _
        // Predicated region
        $region29: #{tpu_custom_call.1} parent=11 // pred_check
          %p375 = pneg %p154
        $region30: #{tpu_custom_call.1} parent=11 // pred_check_branch
          %377 = sbr.rel (%p375) target = $region32
        $region31: #{tpu_custom_call.1} parent=11 // pred_region
          _
        $region32: #{tpu_custom_call.1} parent=11 // pred_fallthru
          _
        // Predicated region
        $region33: #{tpu_custom_call.1} parent=11 // pred_check
          %p378 = pneg %p175
        $region34: #{tpu_custom_call.1} parent=11 // pred_check_branch
          %380 = sbr.rel (%p378) target = $region36
        $region35: #{tpu_custom_call.1} parent=11 // pred_region
          _
        $region36: #{tpu_custom_call.1} parent=11 // pred_fallthru
          _
        // Predicated region
        $region37: #{tpu_custom_call.1} parent=11 // pred_check
          %p381 = pneg %p196
        $region38: #{tpu_custom_call.1} parent=11 // pred_check_branch
          %383 = sbr.rel (%p381) target = $region40
        $region39: #{tpu_custom_call.1} parent=11 // pred_region
          _
        $region40: #{tpu_custom_call.1} parent=11 // pred_fallthru
          _
        // Predicated region
        $region41: #{tpu_custom_call.1} parent=11 // pred_check
          %p384 = pneg %p217
        $region42: #{tpu_custom_call.1} parent=11 // pred_check_branch
          %386 = sbr.rel (%p384) target = $region44
        $region43: #{tpu_custom_call.1} parent=11 // pred_region
          _
        $region44: #{tpu_custom_call.1} parent=11 // pred_fallthru
          _
        // Predicated region
        $region45: #{tpu_custom_call.1} parent=11 // pred_check
          %p387 = pneg %p238
        $region46: #{tpu_custom_call.1} parent=11 // pred_check_branch
          %389 = sbr.rel (%p387) target = $region48
        $region47: #{tpu_custom_call.1} parent=11 // pred_region
          _
        $region48: #{tpu_custom_call.1} parent=11 // pred_fallthru
          _
        // Predicated region
        $region49: #{tpu_custom_call.1} parent=11 // pred_check
          %p390 = pneg %p259
        $region50: #{tpu_custom_call.1} parent=11 // pred_check_branch
          %392 = sbr.rel (%p390) target = $region52
        $region51: #{tpu_custom_call.1} parent=11 // pred_region
          _
        $region52: #{tpu_custom_call.1} parent=11 // pred_fallthru
          _
        // Predicated region
        $region53: #{tpu_custom_call.1} parent=11 // pred_check
          %p393 = pneg %p280
        $region54: #{tpu_custom_call.1} parent=11 // pred_check_branch
          %395 = sbr.rel (%p393) target = $region56
        $region55: #{tpu_custom_call.1} parent=11 // pred_region
          _
        $region56: #{tpu_custom_call.1} parent=11 // pred_fallthru
          _
        // Predicated region
        $region57: #{tpu_custom_call.1} parent=11 // pred_check
          %p396 = pneg %p301
        $region58: #{tpu_custom_call.1} parent=11 // pred_check_branch
          %398 = sbr.rel (%p396) target = $region60
        $region59: #{tpu_custom_call.1} parent=11 // pred_region
          _
        $region60: #{tpu_custom_call.1} parent=11 // pred_fallthru
          _
        // Predicated region
        $region61: #{tpu_custom_call.1} parent=11 // pred_check
          %p399 = pneg %p322
        $region62: #{tpu_custom_call.1} parent=11 // pred_check_branch
          %401 = sbr.rel (%p399) target = $region64
        $region63: #{tpu_custom_call.1} parent=11 // pred_region
          _
        $region64: #{tpu_custom_call.1} parent=11 // pred_fallthru
          _
      $region12: #{tpu_custom_call.1} parent=5 // pred_fallthru
        _
      %p402 = scmp.lt.s32.totalorder %s23, 2
      // Predicated region
      $region65: #{tpu_custom_call.1} parent=5 // pred_check
        %p403 = pneg %p402
      $region66: #{tpu_custom_call.1} parent=5 // pred_check_branch
        %405 = sbr.rel (%p403) target = $region68
      $region67: #{tpu_custom_call.1} parent=5 // pred_region
        // Predicated region
        $region69: #{tpu_custom_call.1} parent=67 // pred_check
          %p406 = pneg %p43
        $region70: #{tpu_custom_call.1} parent=67 // pred_check_branch
          %408 = sbr.rel (%p406) target = $region72
        $region71: #{tpu_custom_call.1} parent=67 // pred_region
          %p409 = scmp.lt.s32.totalorder %s23, 1
          %s410 = scalar_select %p409, %s23, 1
          %s411 = smul.addr %s410, 8
          %s412 = scalar_lea.vmem %s0, %s411
        $region72: #{tpu_custom_call.1} parent=67 // pred_fallthru
          _
      $region68: #{tpu_custom_call.1} parent=5 // pred_fallthru
        _
      %p413 = scmp.le.s32.totalorder 1, %s23
      %p414 = scmp.lt.s32.totalorder %s23, 3
      %p415 = pnand %p413, %p414
      %p416 = pneg %p415
      // Predicated region
      $region73: #{tpu_custom_call.1} parent=5 // pred_check
        _
      $region74: #{tpu_custom_call.1} parent=5 // pred_check_branch
        %418 = sbr.rel (%p415) target = $region76
      $region75: #{tpu_custom_call.1} parent=5 // pred_region
        %s419 = ssub.s32 %s23, 1
        %p420 = scmp.lt.s32.totalorder %s28, 1
        %s421 = scalar_select %p420, %s28, 1
        %s422 = smul.addr %s421, 8
        %s423 = scalar_lea.vmem %s0, %s422
        %p424 = pneg %p49
        %p425 = pneg %p46
        %p426 = pneg %p70
        %p427 = pneg %p67
        %p428 = pneg %p91
        %p429 = pneg %p88
        %p430 = pneg %p112
        %p431 = pneg %p109
        %p432 = pneg %p133
        %p433 = pneg %p130
        %p434 = pneg %p154
        %p435 = pneg %p151
        %p436 = pneg %p175
        %p437 = pneg %p172
        %p438 = pneg %p196
        %p439 = pneg %p193
        %p440 = pneg %p217
        %p441 = pneg %p214
        %p442 = pneg %p238
        %p443 = pneg %p235
        %p444 = pneg %p259
        %p445 = pneg %p256
        %p446 = pneg %p280
        %p447 = pneg %p277
        %p448 = pneg %p301
        %p449 = pneg %p298
        %p450 = pneg %p322
        %p451 = pneg %p319
        %p452 = pneg %p348
        %p453 = pneg %p345
        %s454 = sand.u32 %s335, 1
        %s455 = scalar_lea.sflag [#allocation3], %s454
        %s456 = sand.u32 %s335, 1
        %s457 = smul.addr %s456, 8
        %s458 = scalar_lea.vmem [#allocation2], %s457
        %p459 = scmp.lt.s32.totalorder %s28, 1
        %s460 = scalar_select %p459, %s28, 1
        %s461 = smul.addr %s460, 8
        %s462 = scalar_lea.vmem %s0, %s461
        %v464 = vld [vmem:[%s462] sm:$0xff]
        %v465 = vpack.c.bf16 %v464, %v464
        %v466 = vld [vmem:[%s1] sm:$0xf]
        %v467 = vld [vmem:[%s1 + $0x4] sm:$0xf]
        %v468 = vld [vmem:[%s1 + $0x8] sm:$0xf]
        %v469 = vld [vmem:[%s1 + $0xc] sm:$0xf]
        %v474 = vunpack.c.l.b16 %v466
        %v475 = vunpack.c.l.b16 %v467
        %v476 = vunpack.c.l.b16 %v468
        %v477 = vunpack.c.l.b16 %v469
        %v478 = vpack.c.b16 %v475, %v474
        %v479 = vpack.c.b16 %v477, %v476
        %vm482 = vcmask 261120
        %v484 = vsel %vm482, %v465, 0
        %486 = vmatprep.subr.bf16.mxu0 0
        %487 = vmatpush1.bf16.msra.mxu0 0
        %488 = vmatprep.subr.bf16.mxu0 0
        %489 = vmatpush1.bf16.msra.mxu0 0
        %490 = vmatprep.subr.bf16.mxu0 0
        %491 = vmatpush1.bf16.msra.mxu0 0
        %492 = vmatprep.subr.bf16.mxu0 0
        %493 = vmatpush1.bf16.msra.mxu0 0
        %494 = vmatprep.subr.bf16.mxu0 0
        %495 = vmatpush1.bf16.msra.mxu0 0
        %496 = vmatprep.subr.bf16.mxu0 0
        %497 = vmatpush1.bf16.msra.mxu0 0
        %498 = vmatprep.subr.bf16.mxu0 0
        %499 = vmatpush1.bf16.msra.mxu0 %v479
        %500 = vmatprep.subr.bf16.mxu0 0
        %501 = vmatpush1.bf16.msra.mxu0 %v478
        %502 = vmatprep.subr.bf16.mxu0 0
        %503 = vmatpush2.bf16.msra.mxu0 0
        %504 = vmatprep.subr.bf16.mxu0 0
        %505 = vmatpush2.bf16.msra.mxu0 0
        %506 = vmatprep.subr.bf16.mxu0 0
        %507 = vmatpush2.bf16.msra.mxu0 0
        %508 = vmatprep.subr.bf16.mxu0 0
        %509 = vmatpush2.bf16.msra.mxu0 0
        %510 = vmatprep.subr.bf16.mxu0 0
        %511 = vmatpush2.bf16.msra.mxu0 0
        %512 = vmatprep.subr.bf16.mxu0 0
        %513 = vmatpush2.bf16.msra.mxu0 0
        %514 = vmatprep.subr.bf16.mxu0 0
        %515 = vmatpush2.bf16.msra.mxu0 0
        %516 = vmatprep.subr.bf16.mxu0 0
        %517 = vmatpush2.bf16.msra.mxu0 0
        %518 = vmatprep.mubr.bf16.mxu0 0
        %519 = vmatmul.mubr.bf16.gmra.mxu0 %v484
        %v520 = vpop.f32.mrf.mxu0
        %v521 = vadd.f32 0.0, %v520
        %v522 = vpop.f32.mrf.mxu0
        %v523 = vpop.f32.mrf.mxu0
        %v524 = vpop.f32.mrf.mxu0
        %525 = vdwg.mxu0
        %v526 = vld [vmem:[%s2] sm:$0xf]
        %v527 = vld [vmem:[%s2 + $0x4] sm:$0xf]
        %v528 = vld [vmem:[%s2 + $0x8] sm:$0xf]
        %v529 = vld [vmem:[%s2 + $0xc] sm:$0xf]
        %v534 = vunpack.c.l.b16 %v526
        %v535 = vunpack.c.l.b16 %v527
        %v536 = vunpack.c.l.b16 %v528
        %v537 = vunpack.c.l.b16 %v529
        %v538 = vpack.c.b16 %v535, %v534
        %v539 = vpack.c.b16 %v537, %v536
        %542 = vmatprep.subr.bf16.mxu0 0
        %543 = vmatpush1.bf16.msra.mxu0 0
        %544 = vmatprep.subr.bf16.mxu0 0
        %545 = vmatpush1.bf16.msra.mxu0 0
        %546 = vmatprep.subr.bf16.mxu0 0
        %547 = vmatpush1.bf16.msra.mxu0 0
        %548 = vmatprep.subr.bf16.mxu0 0
        %549 = vmatpush1.bf16.msra.mxu0 0
        %550 = vmatprep.subr.bf16.mxu0 0
        %551 = vmatpush1.bf16.msra.mxu0 0
        %552 = vmatprep.subr.bf16.mxu0 0
        %553 = vmatpush1.bf16.msra.mxu0 0
        %554 = vmatprep.subr.bf16.mxu0 0
        %555 = vmatpush1.bf16.msra.mxu0 %v539
        %556 = vmatprep.subr.bf16.mxu0 0
        %557 = vmatpush1.bf16.msra.mxu0 %v538
        %558 = vmatprep.subr.bf16.mxu0 0
        %559 = vmatpush2.bf16.msra.mxu0 0
        %560 = vmatprep.subr.bf16.mxu0 0
        %561 = vmatpush2.bf16.msra.mxu0 0
        %562 = vmatprep.subr.bf16.mxu0 0
        %563 = vmatpush2.bf16.msra.mxu0 0
        %564 = vmatprep.subr.bf16.mxu0 0
        %565 = vmatpush2.bf16.msra.mxu0 0
        %566 = vmatprep.subr.bf16.mxu0 0
        %567 = vmatpush2.bf16.msra.mxu0 0
        %568 = vmatprep.subr.bf16.mxu0 0
        %569 = vmatpush2.bf16.msra.mxu0 0
        %570 = vmatprep.subr.bf16.mxu0 0
        %571 = vmatpush2.bf16.msra.mxu0 0
        %572 = vmatprep.subr.bf16.mxu0 0
        %573 = vmatpush2.bf16.msra.mxu0 0
        %574 = vmatprep.mubr.bf16.mxu0 0
        %575 = vmatmul.mubr.bf16.gmra.mxu0 %v484
        %v576 = vpop.f32.mrf.mxu0
        %v577 = vadd.f32 0.0, %v576
        %v578 = vpop.f32.mrf.mxu0
        %v579 = vpop.f32.mrf.mxu0
        %v580 = vpop.f32.mrf.mxu0
        %581 = vdwg.mxu0
        %v582 = vld [vmem:[%s3] sm:$0xf]
        %v583 = vld [vmem:[%s3 + $0x4] sm:$0xf]
        %v584 = vld [vmem:[%s3 + $0x8] sm:$0xf]
        %v585 = vld [vmem:[%s3 + $0xc] sm:$0xf]
        %v590 = vunpack.c.l.b16 %v582
        %v591 = vunpack.c.l.b16 %v583
        %v592 = vunpack.c.l.b16 %v584
        %v593 = vunpack.c.l.b16 %v585
        %v594 = vpack.c.b16 %v591, %v590
        %v595 = vpack.c.b16 %v593, %v592
        %598 = vmatprep.subr.bf16.mxu0 0
        %599 = vmatpush1.bf16.msra.mxu0 0
        %600 = vmatprep.subr.bf16.mxu0 0
        %601 = vmatpush1.bf16.msra.mxu0 0
        %602 = vmatprep.subr.bf16.mxu0 0
        %603 = vmatpush1.bf16.msra.mxu0 0
        %604 = vmatprep.subr.bf16.mxu0 0
        %605 = vmatpush1.bf16.msra.mxu0 0
        %606 = vmatprep.subr.bf16.mxu0 0
        %607 = vmatpush1.bf16.msra.mxu0 0
        %608 = vmatprep.subr.bf16.mxu0 0
        %609 = vmatpush1.bf16.msra.mxu0 0
        %610 = vmatprep.subr.bf16.mxu0 0
        %611 = vmatpush1.bf16.msra.mxu0 %v595
        %612 = vmatprep.subr.bf16.mxu0 0
        %613 = vmatpush1.bf16.msra.mxu0 %v594
        %614 = vmatprep.subr.bf16.mxu0 0
        %615 = vmatpush2.bf16.msra.mxu0 0
        %616 = vmatprep.subr.bf16.mxu0 0
        %617 = vmatpush2.bf16.msra.mxu0 0
        %618 = vmatprep.subr.bf16.mxu0 0
        %619 = vmatpush2.bf16.msra.mxu0 0
        %620 = vmatprep.subr.bf16.mxu0 0
        %621 = vmatpush2.bf16.msra.mxu0 0
        %622 = vmatprep.subr.bf16.mxu0 0
        %623 = vmatpush2.bf16.msra.mxu0 0
        %624 = vmatprep.subr.bf16.mxu0 0
        %625 = vmatpush2.bf16.msra.mxu0 0
        %626 = vmatprep.subr.bf16.mxu0 0
        %627 = vmatpush2.bf16.msra.mxu0 0
        %628 = vmatprep.subr.bf16.mxu0 0
        %629 = vmatpush2.bf16.msra.mxu0 0
        %630 = vmatprep.mubr.bf16.mxu0 0
        %631 = vmatmul.mubr.bf16.gmra.mxu0 %v484
        %v632 = vpop.f32.mrf.mxu0
        %v633 = vadd.f32 0.0, %v632
        %v634 = vpop.f32.mrf.mxu0
        %v635 = vpop.f32.mrf.mxu0
        %v636 = vpop.f32.mrf.mxu0
        %637 = vdwg.mxu0
        %v638 = vpack.c.bf16 %v521, %v521
        %v639 = vpack.c.bf16 %v577, %v577
        %v640 = vpack.c.bf16 %v633, %v633
        %v642 = vsel %vm482, %v638, 0
        %v645 = vsel %vm482, %v639, 0
        %647 = vmatprep.subr.bf16.mxu0 0
        %648 = vmatpush1.bf16.xpose.msra.mxu0 0
        %649 = vmatprep.subr.bf16.mxu0 0
        %650 = vmatpush1.bf16.xpose.msra.mxu0 0
        %651 = vmatprep.subr.bf16.mxu0 0
        %652 = vmatpush1.bf16.xpose.msra.mxu0 0
        %653 = vmatprep.subr.bf16.mxu0 0
        %654 = vmatpush1.bf16.xpose.msra.mxu0 0
        %655 = vmatprep.subr.bf16.mxu0 0
        %656 = vmatpush1.bf16.xpose.msra.mxu0 0
        %657 = vmatprep.subr.bf16.mxu0 0
        %658 = vmatpush1.bf16.xpose.msra.mxu0 0
        %659 = vmatprep.subr.bf16.mxu0 0
        %660 = vmatpush1.bf16.xpose.msra.mxu0 0
        %661 = vmatprep.subr.bf16.mxu0 0
        %662 = vmatpush1.bf16.xpose.msra.mxu0 %v645
        %663 = vmatprep.subr.bf16.mxu0 0
        %664 = vmatpush2.bf16.xpose.msra.mxu0 0
        %665 = vmatprep.subr.bf16.mxu0 0
        %666 = vmatpush2.bf16.xpose.msra.mxu0 0
        %667 = vmatprep.subr.bf16.mxu0 0
        %668 = vmatpush2.bf16.xpose.msra.mxu0 0
        %669 = vmatprep.subr.bf16.mxu0 0
        %670 = vmatpush2.bf16.xpose.msra.mxu0 0
        %671 = vmatprep.subr.bf16.mxu0 0
        %672 = vmatpush2.bf16.xpose.msra.mxu0 0
        %673 = vmatprep.subr.bf16.mxu0 0
        %674 = vmatpush2.bf16.xpose.msra.mxu0 0
        %675 = vmatprep.subr.bf16.mxu0 0
        %676 = vmatpush2.bf16.xpose.msra.mxu0 0
        %677 = vmatprep.subr.bf16.mxu0 0
        %678 = vmatpush2.bf16.xpose.msra.mxu0 0
        %679 = vmatprep.mubr.bf16.mxu0 0
        %680 = vmatmul.mubr.bf16.gmra.mxu0 %v642
        %v681 = vpop.f32.mrf.mxu0
        %v682 = vadd.f32 0.0, %v681
        %v683 = vpop.f32.mrf.mxu0
        %v684 = vpop.f32.mrf.mxu0
        %v685 = vpop.f32.mrf.mxu0
        %686 = vdwg.mxu0
        %v687 = vmul.f32 %v682, 0.17677669
        %vm688 = vcmask 64512
        %v689 = vsel %vm688, %v687, -inf
        %690 = vmax.xlane.f32.xlu0 %v689
        %v691 = vpop.xlane.xlu0 %690
        %v692 = vsub.f32 %v687, %v691
        %v693 = vmul.f32 %v692, 1.442695
        %v694 = vpow.pop %v693
        %v695 = vsel %vm688, %v694, 0.0
        %696 = vadd.xlane.f32.xlu0 %v695
        %v697 = vpop.xlane.xlu0 %696
        %v698 = vrcp.pop %v697
        %v699 = vmul.f32 %v694, %v698
        %v700 = vpack.c.bf16 %v699, %v699
        %v702 = vsel %vm688, %v700, 0
        %vm704 = vcmask 1043456
        %v706 = vsel %vm704, %v640, 0
        %708 = vmatprep.subr.bf16.mxu0 0
        %709 = vmatpush1.bf16.msra.mxu0 0
        %710 = vmatprep.subr.bf16.mxu0 0
        %711 = vmatpush1.bf16.msra.mxu0 0
        %712 = vmatprep.subr.bf16.mxu0 0
        %713 = vmatpush1.bf16.msra.mxu0 0
        %714 = vmatprep.subr.bf16.mxu0 0
        %715 = vmatpush1.bf16.msra.mxu0 0
        %716 = vmatprep.subr.bf16.mxu0 0
        %717 = vmatpush1.bf16.msra.mxu0 0
        %718 = vmatprep.subr.bf16.mxu0 0
        %719 = vmatpush1.bf16.msra.mxu0 0
        %720 = vmatprep.subr.bf16.mxu0 0
        %721 = vmatpush1.bf16.msra.mxu0 0
        %722 = vmatprep.subr.bf16.mxu0 0
        %723 = vmatpush1.bf16.msra.mxu0 %v706
        %724 = vmatprep.subr.bf16.mxu0 0
        %725 = vmatpush2.bf16.msra.mxu0 0
        %726 = vmatprep.subr.bf16.mxu0 0
        %727 = vmatpush2.bf16.msra.mxu0 0
        %728 = vmatprep.subr.bf16.mxu0 0
        %729 = vmatpush2.bf16.msra.mxu0 0
        %730 = vmatprep.subr.bf16.mxu0 0
        %731 = vmatpush2.bf16.msra.mxu0 0
        %732 = vmatprep.subr.bf16.mxu0 0
        %733 = vmatpush2.bf16.msra.mxu0 0
        %734 = vmatprep.subr.bf16.mxu0 0
        %735 = vmatpush2.bf16.msra.mxu0 0
        %736 = vmatprep.subr.bf16.mxu0 0
        %737 = vmatpush2.bf16.msra.mxu0 0
        %738 = vmatprep.subr.bf16.mxu0 0
        %739 = vmatpush2.bf16.msra.mxu0 0
        %740 = vmatprep.mubr.bf16.mxu0 0
        %741 = vmatmul.mubr.bf16.gmra.mxu0 %v702
        %v742 = vpop.f32.mrf.mxu0
        %v743 = vadd.f32 0.0, %v742
        %v744 = vpop.f32.mrf.mxu0
        %v745 = vpop.f32.mrf.mxu0
        %v746 = vpop.f32.mrf.mxu0
        %747 = vdwg.mxu0
        %749 = vrot.lane.b32.xlu0 %v638, 96
        %v750 = vpop.permute.xlu0 %749
        %752 = vrot.lane.b32.xlu0 %v639, 96
        %v753 = vpop.permute.xlu0 %752
        %v755 = vsel %vm482, %v750, 0
        %v758 = vsel %vm482, %v753, 0
        %760 = vmatprep.subr.bf16.mxu0 0
        %761 = vmatpush1.bf16.xpose.msra.mxu0 0
        %762 = vmatprep.subr.bf16.mxu0 0
        %763 = vmatpush1.bf16.xpose.msra.mxu0 0
        %764 = vmatprep.subr.bf16.mxu0 0
        %765 = vmatpush1.bf16.xpose.msra.mxu0 0
        %766 = vmatprep.subr.bf16.mxu0 0
        %767 = vmatpush1.bf16.xpose.msra.mxu0 0
        %768 = vmatprep.subr.bf16.mxu0 0
        %769 = vmatpush1.bf16.xpose.msra.mxu0 0
        %770 = vmatprep.subr.bf16.mxu0 0
        %771 = vmatpush1.bf16.xpose.msra.mxu0 0
        %772 = vmatprep.subr.bf16.mxu0 0
        %773 = vmatpush1.bf16.xpose.msra.mxu0 0
        %774 = vmatprep.subr.bf16.mxu0 0
        %775 = vmatpush1.bf16.xpose.msra.mxu0 %v758
        %776 = vmatprep.subr.bf16.mxu0 0
        %777 = vmatpush2.bf16.xpose.msra.mxu0 0
        %778 = vmatprep.subr.bf16.mxu0 0
        %779 = vmatpush2.bf16.xpose.msra.mxu0 0
        %780 = vmatprep.subr.bf16.mxu0 0
        %781 = vmatpush2.bf16.xpose.msra.mxu0 0
        %782 = vmatprep.subr.bf16.mxu0 0
        %783 = vmatpush2.bf16.xpose.msra.mxu0 0
        %784 = vmatprep.subr.bf16.mxu0 0
        %785 = vmatpush2.bf16.xpose.msra.mxu0 0
        %786 = vmatprep.subr.bf16.mxu0 0
        %787 = vmatpush2.bf16.xpose.msra.mxu0 0
        %788 = vmatprep.subr.bf16.mxu0 0
        %789 = vmatpush2.bf16.xpose.msra.mxu0 0
        %790 = vmatprep.subr.bf16.mxu0 0
        %791 = vmatpush2.bf16.xpose.msra.mxu0 0
        %792 = vmatprep.mubr.bf16.mxu0 0
        %793 = vmatmul.mubr.bf16.gmra.mxu0 %v755
        %v794 = vpop.f32.mrf.mxu0
        %v795 = vadd.f32 0.0, %v794
        %v796 = vpop.f32.mrf.mxu0
        %v797 = vpop.f32.mrf.mxu0
        %v798 = vpop.f32.mrf.mxu0
        %799 = vdwg.mxu0
        %v800 = vmul.f32 %v795, 0.17677669
        %v801 = vsel %vm688, %v800, -inf
        %802 = vmax.xlane.f32.xlu0 %v801
        %v803 = vpop.xlane.xlu0 %802
        %v804 = vsub.f32 %v800, %v803
        %v805 = vmul.f32 %v804, 1.442695
        %v806 = vpow.pop %v805
        %v807 = vsel %vm688, %v806, 0.0
        %808 = vadd.xlane.f32.xlu0 %v807
        %v809 = vpop.xlane.xlu0 %808
        %v810 = vrcp.pop %v809
        %v811 = vmul.f32 %v806, %v810
        %v812 = vpack.c.bf16 %v811, %v811
        %814 = vrot.lane.b32.xlu0 %v640, 96
        %v815 = vpop.permute.xlu0 %814
        %v817 = vsel %vm688, %v812, 0
        %v820 = vsel %vm704, %v815, 0
        %822 = vmatprep.subr.bf16.mxu0 0
        %823 = vmatpush1.bf16.msra.mxu0 0
        %824 = vmatprep.subr.bf16.mxu0 0
        %825 = vmatpush1.bf16.msra.mxu0 0
        %826 = vmatprep.subr.bf16.mxu0 0
        %827 = vmatpush1.bf16.msra.mxu0 0
        %828 = vmatprep.subr.bf16.mxu0 0
        %829 = vmatpush1.bf16.msra.mxu0 0
        %830 = vmatprep.subr.bf16.mxu0 0
        %831 = vmatpush1.bf16.msra.mxu0 0
        %832 = vmatprep.subr.bf16.mxu0 0
        %833 = vmatpush1.bf16.msra.mxu0 0
        %834 = vmatprep.subr.bf16.mxu0 0
        %835 = vmatpush1.bf16.msra.mxu0 0
        %836 = vmatprep.subr.bf16.mxu0 0
        %837 = vmatpush1.bf16.msra.mxu0 %v820
        %838 = vmatprep.subr.bf16.mxu0 0
        %839 = vmatpush2.bf16.msra.mxu0 0
        %840 = vmatprep.subr.bf16.mxu0 0
        %841 = vmatpush2.bf16.msra.mxu0 0
        %842 = vmatprep.subr.bf16.mxu0 0
        %843 = vmatpush2.bf16.msra.mxu0 0
        %844 = vmatprep.subr.bf16.mxu0 0
        %845 = vmatpush2.bf16.msra.mxu0 0
        %846 = vmatprep.subr.bf16.mxu0 0
        %847 = vmatpush2.bf16.msra.mxu0 0
        %848 = vmatprep.subr.bf16.mxu0 0
        %849 = vmatpush2.bf16.msra.mxu0 0
        %850 = vmatprep.subr.bf16.mxu0 0
        %851 = vmatpush2.bf16.msra.mxu0 0
        %852 = vmatprep.subr.bf16.mxu0 0
        %853 = vmatpush2.bf16.msra.mxu0 0
        %854 = vmatprep.mubr.bf16.mxu0 0
        %855 = vmatmul.mubr.bf16.gmra.mxu0 %v817
        %v856 = vpop.f32.mrf.mxu0
        %v857 = vadd.f32 0.0, %v856
        %v858 = vpop.f32.mrf.mxu0
        %v859 = vpop.f32.mrf.mxu0
        %v860 = vpop.f32.mrf.mxu0
        %861 = vdwg.mxu0
        %863 = vrot.lane.b32.xlu0 %v857, 32
        %v864 = vpop.permute.xlu0 %863
        %v866 = vsel %vm482, %v743, %v864
        %v867 = vpack.c.bf16 %v866, %v866
        %v868 = vld [vmem:[%s4] sm:$0xf]
        %v869 = vld [vmem:[%s4 + $0x4] sm:$0xf]
        %v870 = vld [vmem:[%s4 + $0x8] sm:$0xf]
        %v871 = vld [vmem:[%s4 + $0xc] sm:$0xf]
        %v872 = vld [vmem:[%s4 + $0x10] sm:$0xf]
        %v873 = vld [vmem:[%s4 + $0x14] sm:$0xf]
        %v874 = vld [vmem:[%s4 + $0x18] sm:$0xf]
        %v875 = vld [vmem:[%s4 + $0x1c] sm:$0xf]
        %v876 = vld [vmem:[%s5] sm:$0x1]
        %v878 = vlaneseq
        %v879 = vshrl.u32 %v878, 7
        %v880 = vsub.s32 0, %v879
        %v881 = vrot.slane %v876, %v880
        %v891 = vunpack.c.l.b16 %v868
        %v892 = vunpack.c.l.b16 %v869
        %v893 = vunpack.c.l.b16 %v870
        %v894 = vunpack.c.l.b16 %v871
        %v895 = vunpack.c.l.b16 %v872
        %v896 = vunpack.c.l.b16 %v873
        %v897 = vunpack.c.l.b16 %v874
        %v898 = vunpack.c.l.b16 %v875
        %v899 = vpack.c.b16 %v892, %v891
        %v900 = vpack.c.b16 %v894, %v893
        %v901 = vpack.c.b16 %v896, %v895
        %v902 = vpack.c.b16 %v898, %v897
        %vm907 = vcmask 523264
        %v909 = vsel %vm907, %v867, 0
        %911 = vmatprep.subr.bf16.mxu0 0
        %912 = vmatpush1.bf16.msra.mxu0 0
        %913 = vmatprep.subr.bf16.mxu0 0
        %914 = vmatpush1.bf16.msra.mxu0 0
        %915 = vmatprep.subr.bf16.mxu0 0
        %916 = vmatpush1.bf16.msra.mxu0 0
        %917 = vmatprep.subr.bf16.mxu0 0
        %918 = vmatpush1.bf16.msra.mxu0 0
        %919 = vmatprep.subr.bf16.mxu0 0
        %920 = vmatpush1.bf16.msra.mxu0 %v902
        %921 = vmatprep.subr.bf16.mxu0 0
        %922 = vmatpush1.bf16.msra.mxu0 %v901
        %923 = vmatprep.subr.bf16.mxu0 0
        %924 = vmatpush1.bf16.msra.mxu0 %v900
        %925 = vmatprep.subr.bf16.mxu0 0
        %926 = vmatpush1.bf16.msra.mxu0 %v899
        %927 = vmatprep.subr.bf16.mxu0 0
        %928 = vmatpush2.bf16.msra.mxu0 0
        %929 = vmatprep.subr.bf16.mxu0 0
        %930 = vmatpush2.bf16.msra.mxu0 0
        %931 = vmatprep.subr.bf16.mxu0 0
        %932 = vmatpush2.bf16.msra.mxu0 0
        %933 = vmatprep.subr.bf16.mxu0 0
        %934 = vmatpush2.bf16.msra.mxu0 0
        %935 = vmatprep.subr.bf16.mxu0 0
        %936 = vmatpush2.bf16.msra.mxu0 0
        %937 = vmatprep.subr.bf16.mxu0 0
        %938 = vmatpush2.bf16.msra.mxu0 0
        %939 = vmatprep.subr.bf16.mxu0 0
        %940 = vmatpush2.bf16.msra.mxu0 0
        %941 = vmatprep.subr.bf16.mxu0 0
        %942 = vmatpush2.bf16.msra.mxu0 0
        %943 = vmatprep.mubr.bf16.mxu0 0
        %944 = vmatmul.mubr.bf16.gmra.mxu0 %v909
        %v945 = vpop.f32.mrf.mxu0
        %v946 = vadd.f32 %v881, %v945
        %v947 = vpop.f32.mrf.mxu0
        %v948 = vpop.f32.mrf.mxu0
        %v949 = vpop.f32.mrf.mxu0
        %950 = vdwg.mxu0
        %v951 = vadd.f32 %v946, %v464
        %v952 = vld [vmem:[%s6] sm:$0x1]
        %v953 = vld [vmem:[%s7] sm:$0x1]
        %v954 = vsel %vm482, %v951, 0.0
        %955 = vadd.xlane.f32.xlu0 %v954
        %v956 = vpop.xlane.xlu0 %955
        %v957 = vrcp.pop 32.0
        %v958 = vmul.f32 %v956, %v957
        %v959 = vsub.f32 %v951, %v958
        %v960 = vmul.f32 %v959, %v959
        %v961 = vsel %vm482, %v960, 0.0
        %962 = vadd.xlane.f32.xlu0 %v961
        %v963 = vpop.xlane.xlu0 %962
        %v964 = vmul.f32 %v963, %v957
        %v965 = vadd.f32 %v964, 1e-05
        %v966 = vrsqrt.pop %v965
        %v967 = vmul.f32 %v959, %v966
        %v969 = vlaneseq
        %v970 = vshrl.u32 %v969, 7
        %v971 = vsub.s32 0, %v970
        %v972 = vrot.slane %v952, %v971
        %v974 = vmul.f32 %v967, %v972
        %v976 = vlaneseq
        %v977 = vshrl.u32 %v976, 7
        %v978 = vsub.s32 0, %v977
        %v979 = vrot.slane %v953, %v978
        %v981 = vadd.f32 %v974, %v979
        %v982 = vpack.c.bf16 %v981, %v981
        %v983 = vld [vmem:[%s8] sm:$0xf]
        %v984 = vld [vmem:[%s8 + $0x4] sm:$0xf]
        %v985 = vld [vmem:[%s8 + $0x8] sm:$0xf]
        %v986 = vld [vmem:[%s8 + $0xc] sm:$0xf]
        %v987 = vld [vmem:[%s9] sm:$0x1]
        %v989 = vlaneseq
        %v990 = vshrl.u32 %v989, 7
        %v991 = vsub.s32 0, %v990
        %v992 = vrot.slane %v987, %v991
        %v998 = vunpack.c.l.b16 %v983
        %v999 = vunpack.c.l.b16 %v984
        %v1000 = vunpack.c.l.b16 %v985
        %v1001 = vunpack.c.l.b16 %v986
        %v1002 = vpack.c.b16 %v999, %v998
        %v1003 = vpack.c.b16 %v1001, %v1000
        %v1007 = vsel %vm482, %v982, 0
        %1009 = vmatprep.subr.bf16.mxu0 0
        %1010 = vmatpush1.bf16.msra.mxu0 0
        %1011 = vmatprep.subr.bf16.mxu0 0
        %1012 = vmatpush1.bf16.msra.mxu0 0
        %1013 = vmatprep.subr.bf16.mxu0 0
        %1014 = vmatpush1.bf16.msra.mxu0 0
        %1015 = vmatprep.subr.bf16.mxu0 0
        %1016 = vmatpush1.bf16.msra.mxu0 0
        %1017 = vmatprep.subr.bf16.mxu0 0
        %1018 = vmatpush1.bf16.msra.mxu0 0
        %1019 = vmatprep.subr.bf16.mxu0 0
        %1020 = vmatpush1.bf16.msra.mxu0 0
        %1021 = vmatprep.subr.bf16.mxu0 0
        %1022 = vmatpush1.bf16.msra.mxu0 %v1003
        %1023 = vmatprep.subr.bf16.mxu0 0
        %1024 = vmatpush1.bf16.msra.mxu0 %v1002
        %1025 = vmatprep.subr.bf16.mxu0 0
        %1026 = vmatpush2.bf16.msra.mxu0 0
        %1027 = vmatprep.subr.bf16.mxu0 0
        %1028 = vmatpush2.bf16.msra.mxu0 0
        %1029 = vmatprep.subr.bf16.mxu0 0
        %1030 = vmatpush2.bf16.msra.mxu0 0
        %1031 = vmatprep.subr.bf16.mxu0 0
        %1032 = vmatpush2.bf16.msra.mxu0 0
        %1033 = vmatprep.subr.bf16.mxu0 0
        %1034 = vmatpush2.bf16.msra.mxu0 0
        %1035 = vmatprep.subr.bf16.mxu0 0
        %1036 = vmatpush2.bf16.msra.mxu0 0
        %1037 = vmatprep.subr.bf16.mxu0 0
        %1038 = vmatpush2.bf16.msra.mxu0 0
        %1039 = vmatprep.subr.bf16.mxu0 0
        %1040 = vmatpush2.bf16.msra.mxu0 0
        %1041 = vmatprep.mubr.bf16.mxu0 0
        %1042 = vmatmul.mubr.bf16.gmra.mxu0 %v1007
        %v1043 = vpop.f32.mrf.mxu0
        %v1044 = vadd.f32 %v992, %v1043
        %v1045 = vpop.f32.mrf.mxu0
        %v1046 = vpop.f32.mrf.mxu0
        %v1047 = vpop.f32.mrf.mxu0
        %1048 = vdwg.mxu0
        %v1049 = vmax.f32 %v1044, 0.0
        %v1050 = vpack.c.bf16 %v1049, %v1049
        %v1051 = vld [vmem:[%s10] sm:$0xf]
        %v1052 = vld [vmem:[%s10 + $0x4] sm:$0xf]
        %v1053 = vld [vmem:[%s10 + $0x8] sm:$0xf]
        %v1054 = vld [vmem:[%s10 + $0xc] sm:$0xf]
        %v1055 = vld [vmem:[%s10 + $0x10] sm:$0xf]
        %v1056 = vld [vmem:[%s10 + $0x14] sm:$0xf]
        %v1057 = vld [vmem:[%s10 + $0x18] sm:$0xf]
        %v1058 = vld [vmem:[%s10 + $0x1c] sm:$0xf]
        %v1059 = vld [vmem:[%s10 + $0x20] sm:$0xf]
        %v1060 = vld [vmem:[%s10 + $0x24] sm:$0xf]
        %v1061 = vld [vmem:[%s10 + $0x28] sm:$0xf]
        %v1062 = vld [vmem:[%s10 + $0x2c] sm:$0xf]
        %v1063 = vld [vmem:[%s10 + $0x30] sm:$0xf]
        %v1064 = vld [vmem:[%s10 + $0x34] sm:$0xf]
        %v1065 = vld [vmem:[%s10 + $0x38] sm:$0xf]
        %v1066 = vld [vmem:[%s10 + $0x3c] sm:$0xf]
        %v1067 = vld [vmem:[%s11] sm:$0x1]
        %v1069 = vlaneseq
        %v1070 = vshrl.u32 %v1069, 7
        %v1071 = vsub.s32 0, %v1070
        %v1072 = vrot.slane %v1067, %v1071
        %v1090 = vunpack.c.l.b16 %v1051
        %v1091 = vunpack.c.l.b16 %v1052
        %v1092 = vunpack.c.l.b16 %v1053
        %v1093 = vunpack.c.l.b16 %v1054
        %v1094 = vunpack.c.l.b16 %v1055
        %v1095 = vunpack.c.l.b16 %v1056
        %v1096 = vunpack.c.l.b16 %v1057
        %v1097 = vunpack.c.l.b16 %v1058
        %v1098 = vunpack.c.l.b16 %v1059
        %v1099 = vunpack.c.l.b16 %v1060
        %v1100 = vunpack.c.l.b16 %v1061
        %v1101 = vunpack.c.l.b16 %v1062
        %v1102 = vunpack.c.l.b16 %v1063
        %v1103 = vunpack.c.l.b16 %v1064
        %v1104 = vunpack.c.l.b16 %v1065
        %v1105 = vunpack.c.l.b16 %v1066
        %v1106 = vpack.c.b16 %v1091, %v1090
        %v1107 = vpack.c.b16 %v1093, %v1092
        %v1108 = vpack.c.b16 %v1095, %v1094
        %v1109 = vpack.c.b16 %v1097, %v1096
        %v1110 = vpack.c.b16 %v1099, %v1098
        %v1111 = vpack.c.b16 %v1101, %v1100
        %v1112 = vpack.c.b16 %v1103, %v1102
        %v1113 = vpack.c.b16 %v1105, %v1104
        %1122 = vmatprep.subr.bf16.mxu0 0
        %1123 = vmatpush1.bf16.msra.mxu0 %v1113
        %1124 = vmatprep.subr.bf16.mxu0 0
        %1125 = vmatpush1.bf16.msra.mxu0 %v1112
        %1126 = vmatprep.subr.bf16.mxu0 0
        %1127 = vmatpush1.bf16.msra.mxu0 %v1111
        %1128 = vmatprep.subr.bf16.mxu0 0
        %1129 = vmatpush1.bf16.msra.mxu0 %v1110
        %1130 = vmatprep.subr.bf16.mxu0 0
        %1131 = vmatpush1.bf16.msra.mxu0 %v1109
        %1132 = vmatprep.subr.bf16.mxu0 0
        %1133 = vmatpush1.bf16.msra.mxu0 %v1108
        %1134 = vmatprep.subr.bf16.mxu0 0
        %1135 = vmatpush1.bf16.msra.mxu0 %v1107
        %1136 = vmatprep.subr.bf16.mxu0 0
        %1137 = vmatpush1.bf16.msra.mxu0 %v1106
        %1138 = vmatprep.subr.bf16.mxu0 0
        %1139 = vmatpush2.bf16.msra.mxu0 0
        %1140 = vmatprep.subr.bf16.mxu0 0
        %1141 = vmatpush2.bf16.msra.mxu0 0
        %1142 = vmatprep.subr.bf16.mxu0 0
        %1143 = vmatpush2.bf16.msra.mxu0 0
        %1144 = vmatprep.subr.bf16.mxu0 0
        %1145 = vmatpush2.bf16.msra.mxu0 0
        %1146 = vmatprep.subr.bf16.mxu0 0
        %1147 = vmatpush2.bf16.msra.mxu0 0
        %1148 = vmatprep.subr.bf16.mxu0 0
        %1149 = vmatpush2.bf16.msra.mxu0 0
        %1150 = vmatprep.subr.bf16.mxu0 0
        %1151 = vmatpush2.bf16.msra.mxu0 0
        %1152 = vmatprep.subr.bf16.mxu0 0
        %1153 = vmatpush2.bf16.msra.mxu0 0
        %1154 = vmatprep.mubr.bf16.mxu0 0
        %1155 = vmatmul.mubr.bf16.gmra.mxu0 %v1050
        %v1156 = vpop.f32.mrf.mxu0
        %v1157 = vadd.f32 %v1072, %v1156
        %v1158 = vpop.f32.mrf.mxu0
        %v1159 = vpop.f32.mrf.mxu0
        %v1160 = vpop.f32.mrf.mxu0
        %1161 = vdwg.mxu0
        %v1162 = vadd.f32 %v1157, %v981
        %v1163 = vld [vmem:[%s12] sm:$0x1]
        %v1164 = vld [vmem:[%s13] sm:$0x1]
        %v1165 = vsel %vm482, %v1162, 0.0
        %1166 = vadd.xlane.f32.xlu0 %v1165
        %v1167 = vpop.xlane.xlu0 %1166
        %v1168 = vmul.f32 %v1167, %v957
        %v1169 = vsub.f32 %v1162, %v1168
        %v1170 = vmul.f32 %v1169, %v1169
        %v1171 = vsel %vm482, %v1170, 0.0
        %1172 = vadd.xlane.f32.xlu0 %v1171
        %v1173 = vpop.xlane.xlu0 %1172
        %v1174 = vmul.f32 %v1173, %v957
        %v1175 = vadd.f32 %v1174, 1e-05
        %v1176 = vrsqrt.pop %v1175
        %v1177 = vmul.f32 %v1169, %v1176
        %v1179 = vlaneseq
        %v1180 = vshrl.u32 %v1179, 7
        %v1181 = vsub.s32 0, %v1180
        %v1182 = vrot.slane %v1163, %v1181
        %v1184 = vmul.f32 %v1177, %v1182
        %v1186 = vlaneseq
        %v1187 = vshrl.u32 %v1186, 7
        %v1188 = vsub.s32 0, %v1187
        %v1189 = vrot.slane %v1164, %v1188
        %v1191 = vadd.f32 %v1184, %v1189
        %1192 = vst.msk [vmem:[%s458] sm:$0xff] %vm482, %v1191
        %s1193 = sand.u32 %s335, 1
        %s1194 = scalar_lea.sflag [#allocation3], %s1193
        %s1195 = sand.u32 %s335, 1
        %s1196 = smul.addr %s1195, 8
        %s1197 = scalar_lea.vmem [#allocation2], %s1196
        // Predicated region
        $region77: #{tpu_custom_call.1} parent=75 // pred_check
          %p1198 = pneg %p345
        $region78: #{tpu_custom_call.1} parent=75 // pred_check_branch
          %1200 = sbr.rel (%p1198) target = $region80
        $region79: #{tpu_custom_call.1} parent=75 // pred_region
          %s1202 = ssub.s32 128, 128
          %1203 = vsyncadd %s1194, %s1202
          %s1204 = smul.addr %s28, 128
          %s1205 = scalar_lea.hbm %s14, %s1204
          %s1207 = sshll.u32 %s1197, 4
          %s1208 = int_to_ptr.vmem [resolvable:$true] %s1207
          %1210 = dma.vmem_to_hbm [thread:$0]  %s1208, 128, %s1205, %s1194
        $region80: #{tpu_custom_call.1} parent=75 // pred_fallthru
          _
      $region76: #{tpu_custom_call.1} parent=5 // pred_fallthru
        _
      %p1211 = scmp.le.s32.totalorder 2, %s23
      // Predicated region
      $region81: #{tpu_custom_call.1} parent=5 // pred_check
        %p1212 = pneg %p1211
      $region82: #{tpu_custom_call.1} parent=5 // pred_check_branch
        %1214 = sbr.rel (%p1212) target = $region84
      $region83: #{tpu_custom_call.1} parent=5 // pred_region
        %s1215 = ssub.s32 %s23, 2
        // Predicated region
        $region85: #{tpu_custom_call.1} parent=83 // pred_check
          %p1216 = pneg %p351
        $region86: #{tpu_custom_call.1} parent=83 // pred_check_branch
          %1218 = sbr.rel (%p1216) target = $region88
        $region87: #{tpu_custom_call.1} parent=83 // pred_region
          %s1219 = sand.u32 %s336, 1
          %s1220 = scalar_lea.sflag [#allocation3], %s1219
          %s1221 = sand.u32 %s336, 1
          %s1222 = smul.addr %s1221, 8
          %s1223 = scalar_lea.vmem [#allocation2], %s1222
          %1224 = dma.done %s1220, 128
        $region88: #{tpu_custom_call.1} parent=83 // pred_fallthru
          _
      $region84: #{tpu_custom_call.1} parent=5 // pred_fallthru
        _
    $region6: #{tpu_custom_call.1} parent=1 // loop_footer
      %s27 = sadd.s32 1, %s23
    $region7: #{tpu_custom_call.1} parent=1 // loop_footer_branch
      %22 = sbr.rel target = $region3
    $region8: #{tpu_custom_call.1} parent=1 // loop_exit
      _
    %1225 = vsyncpa [#allocation3], 1
    %s1226 = scalar_lea.sflag [#allocation3], 1
    %1227 = vsyncpa %s1226, 1

</llo_original>
